<compile_context>
chip_gen: v5e
topology: v5e:2x2
jax: 0.10.0
libtpu: 0.0.40
codegen_flags: <defaults>
</compile_context>

<pallas_src>
import functools

import jax
import jax.numpy as jnp
from jax.experimental import pallas as pl
from jax.experimental.pallas import tpu as pltpu


_VMEM_LIMIT = 48 * 1024 * 1024  # safe on v5e/v6e (128 MiB) and v7x (64 MiB)


# --------------------------------------------------------------------------
# Linear kernels (M-tiled, weight resident, fused epilogues)
# --------------------------------------------------------------------------

def _linear_kernel(x_ref, wt_ref, b_ref, o_ref):
    # x: (bm, Cin) f32, wt: (Cin, Cout) compute dtype, b: (1, Cout) f32
    x = x_ref[...].astype(wt_ref.dtype)
    acc = jnp.dot(x, wt_ref[...], preferred_element_type=jnp.float32)
    o_ref[...] = (acc + b_ref[...]).astype(o_ref.dtype)


def pallas_linear(x2d, weight, bias, *, compute_dtype, out_dtype, block_m=512):
    """y = x @ weight.T + bias (torch F.linear semantics), tiled over rows."""
    M, Cin = x2d.shape
    Cout = weight.shape[0]
    wt = weight.T.astype(compute_dtype)            # (Cin, Cout), resident block
    b = bias.astype(jnp.float32).reshape(1, Cout)
    bm = min(block_m, M)
    return pl.pallas_call(
        _linear_kernel,
        out_shape=jax.ShapeDtypeStruct((M, Cout), out_dtype),
        grid=(pl.cdiv(M, bm),),
        in_specs=[
            pl.BlockSpec((bm, Cin), lambda i: (i, 0)),
            pl.BlockSpec((Cin, Cout), lambda i: (0, 0)),
            pl.BlockSpec((1, Cout), lambda i: (0, 0)),
        ],
        out_specs=pl.BlockSpec((bm, Cout), lambda i: (i, 0)),
        compiler_params=pltpu.CompilerParams(
            dimension_semantics=("parallel",),
            vmem_limit_bytes=_VMEM_LIMIT),
    )(x2d, wt, b)


def _linear_sum_residual_kernel(xa_ref, xb_ref, wt_ref, b_ref, a_ref, r_ref, o_ref):
    # out = residual + ((xa + xb) @ wt + b) * alpha      (all fused in-VMEM)
    x = (xa_ref[...] + xb_ref[...]).astype(wt_ref.dtype)
    y = jnp.dot(x, wt_ref[...], preferred_element_type=jnp.float32) + b_ref[...]
    o_ref[...] = (r_ref[...] + y * a_ref[...]).astype(o_ref.dtype)


def pallas_linear_sum_residual(xa, xb, weight, bias, alpha, residual, *,
                               compute_dtype, block_m=512):
    M, Cin = xa.shape
    Cout = weight.shape[0]
    wt = weight.T.astype(compute_dtype)
    b = bias.astype(jnp.float32).reshape(1, Cout)
    a = alpha.astype(jnp.float32).reshape(1, Cout)
    bm = min(block_m, M)
    return pl.pallas_call(
        _linear_sum_residual_kernel,
        out_shape=jax.ShapeDtypeStruct((M, Cout), jnp.float32),
        grid=(pl.cdiv(M, bm),),
        in_specs=[
            pl.BlockSpec((bm, Cin), lambda i: (i, 0)),
            pl.BlockSpec((bm, Cin), lambda i: (i, 0)),
            pl.BlockSpec((Cin, Cout), lambda i: (0, 0)),
            pl.BlockSpec((1, Cout), lambda i: (0, 0)),
            pl.BlockSpec((1, Cout), lambda i: (0, 0)),
            pl.BlockSpec((bm, Cout), lambda i: (i, 0)),
        ],
        out_specs=pl.BlockSpec((bm, Cout), lambda i: (i, 0)),
        compiler_params=pltpu.CompilerParams(
            dimension_semantics=("parallel",),
            vmem_limit_bytes=_VMEM_LIMIT),
    )(xa, xb, wt, b, a, residual)


# --------------------------------------------------------------------------
# Flash-style multi-head attention kernel
# grid = (groups, heads, kv_tiles); online softmax scratch in VMEM
# --------------------------------------------------------------------------

def _mha_flash_kernel(q_ref, k_ref, v_ref, o_ref, m_sc, l_sc, acc_sc,
                      *, scale, approx):
    kv = pl.program_id(2)

    @pl.when(kv == 0)
    def _():
        m_sc[...] = jnp.full(m_sc.shape, -jnp.inf, m_sc.dtype)
        l_sc[...] = jnp.zeros(l_sc.shape, l_sc.dtype)
        acc_sc[...] = jnp.zeros(acc_sc.shape, acc_sc.dtype)

    q = q_ref[0, 0] * scale                     # (Nq, hc)
    k = k_ref[0, 0]                             # (bk, hc)
    v = v_ref[0, 0]                             # (bk, hc)

    # q @ k.T without an explicit in-kernel transpose
    s = jax.lax.dot_general(q, k, (((1,), (1,)), ((), ())),
                            preferred_element_type=jnp.float32)   # (Nq, bk) f32

    m_prev = m_sc[...]
    m_new = jnp.maximum(m_prev, jnp.max(s, axis=-1, keepdims=True))
    corr = jnp.exp(m_prev - m_new)
    p = jnp.exp(s - m_new)
    l_sc[...] = corr * l_sc[...] + jnp.sum(p, axis=-1, keepdims=True)
    acc_sc[...] = corr * acc_sc[...] + jnp.dot(
        p.astype(v.dtype), v, preferred_element_type=jnp.float32)
    m_sc[...] = m_new

    @pl.when(kv == pl.num_programs(2) - 1)
    def _():
        inv_l = pl.reciprocal(l_sc[...], approx=approx)
        o_ref[0, 0] = (acc_sc[...] * inv_l).astype(o_ref.dtype)


def _pick_kv_block(n):
    if n <= 1024:
        return n
    for cand in (1024, 512, 256, 128):
        if n % cand == 0:
            return cand
    return n


def pallas_mha(q, k, v, *, scale, approx):
    """Self-attention per (group, head): q,k,v are (G, nh, N, hc) -> (G, nh, N, hc)."""
    G, nh, Nq, hc = q.shape
    Nk = k.shape[2]
    bk = _pick_kv_block(Nk)
    nkv = Nk // bk
    kernel = functools.partial(_mha_flash_kernel, scale=scale, approx=approx)
    return pl.pallas_call(
        kernel,
        out_shape=jax.ShapeDtypeStruct((G, nh, Nq, hc), jnp.float32),
        grid=(G, nh, nkv),
        in_specs=[
            pl.BlockSpec((1, 1, Nq, hc), lambda g, h, kk: (g, h, 0, 0)),
            pl.BlockSpec((1, 1, bk, hc), lambda g, h, kk: (g, h, kk, 0)),
            pl.BlockSpec((1, 1, bk, hc), lambda g, h, kk: (g, h, kk, 0)),
        ],
        out_specs=pl.BlockSpec((1, 1, Nq, hc), lambda g, h, kk: (g, h, 0, 0)),
        scratch_shapes=[
            pltpu.VMEM((Nq, 1), jnp.float32),    # running max
            pltpu.VMEM((Nq, 1), jnp.float32),    # running denom
            pltpu.VMEM((Nq, hc), jnp.float32),   # running numerator
        ],
        compiler_params=pltpu.CompilerParams(
            dimension_semantics=("parallel", "parallel", "arbitrary"),
            vmem_limit_bytes=_VMEM_LIMIT),
    )(q, k, v)


# --------------------------------------------------------------------------
# Module forward (t2d variant, use_cls_token=False)
# --------------------------------------------------------------------------

def attention_t2d_forward(x, size, params, num_heads, *, fast_math=True,
                          block_m=512):
    B, N, C = x.shape
    T, H, W = size
    assert N == T * H * W
    hc = C // num_heads
    scale = float(hc) ** (-0.5)
    cdt = jnp.bfloat16 if fast_math else jnp.float32

    x2 = x.reshape(B * N, C)

    # ---------------- _forward_2d ----------------
    qkv = pallas_linear(x2, params["in_proj_weight"], params["in_proj_bias"],
                        compute_dtype=cdt, out_dtype=cdt, block_m=block_m)
    # 'b (t hw) (3 nh hc)' -> q/k/v each (B*T, nh, HW, hc)   (one fused transpose)
    qkv = jnp.transpose(qkv.reshape(B * T, H * W, 3, num_heads, hc),
                        (2, 0, 3, 1, 4))
    o2d = pallas_mha(qkv[0], qkv[1], qkv[2], scale=scale, approx=fast_math)
    o2d = jnp.transpose(o2d, (0, 2, 1, 3)).reshape(B * N, C)
    x2d = pallas_linear(o2d, params["out_proj_w"], params["out_proj_b"],
                        compute_dtype=cdt, out_dtype=jnp.float32, block_m=block_m)

    # ---------------- temporal (t2d, no cls token) ----------------
    xt = pallas_linear(x2d, params["in_proj_weight_t"], params["in_proj_bias_t"],
                       compute_dtype=cdt, out_dtype=cdt, block_m=block_m)
    xt = xt.reshape(B, T, H, W, 3, num_heads, hc)

    # 'b (t h w) c -> (b w) (t h) c'  fused with the head split
    qth = jnp.transpose(xt, (4, 0, 3, 5, 1, 2, 6)).reshape(
        3, B * W, num_heads, T * H, hc)
    oth = pallas_mha(qth[0], qth[1], qth[2], scale=scale, approx=fast_math)
    x_th = jnp.transpose(oth.reshape(B, W, num_heads, T, H, hc),
                         (0, 3, 4, 1, 2, 5)).reshape(B * N, C)

    # 'b (t h w) c -> (b h) (t w) c'  fused with the head split
    qtw = jnp.transpose(xt, (4, 0, 2, 5, 1, 3, 6)).reshape(
        3, B * H, num_heads, T * W, hc)
    otw = pallas_mha(qtw[0], qtw[1], qtw[2], scale=scale, approx=fast_math)
    x_tw = jnp.transpose(otw.reshape(B, H, num_heads, T, W, hc),
                         (0, 3, 1, 4, 2, 5)).reshape(B * N, C)

    # out = x2d + ((x_th + x_tw) @ W_t.T + b_t) * alpha   (single fused kernel)
    out = pallas_linear_sum_residual(
        x_th, x_tw, params["out_proj_t_w"], params["out_proj_t_b"],
        params["alpha"], x2d, compute_dtype=cdt, block_m=block_m)
    return out.reshape(B, N, C)


# --------------------------------------------------------------------------
# Pure-JAX reference (same math, no Pallas) for verification
# --------------------------------------------------------------------------

_HI = jax.lax.Precision.HIGHEST


def _ref_attention(qkv, num_heads, scale):
    G, N, threeC = qkv.shape
    C = threeC // 3
    hc = C // num_heads
    qkv = qkv.reshape(G, N, 3, num_heads, hc).transpose(2, 0, 3, 1, 4)
    q, k, v = qkv[0] * scale, qkv[1], qkv[2]
    s = jnp.einsum("ghnd,ghmd->ghnm", q, k, precision=_HI)
    p = jax.nn.softmax(s, axis=-1)
    o = jnp.einsum("ghnm,ghmd->ghnd", p, v, precision=_HI)
    return o.transpose(0, 2, 1, 3).reshape(G, N, C)


def reference_t2d_forward(x, size, params, num_heads):
    B, N, C = x.shape
    T, H, W = size
    scale = (C // num_heads) ** (-0.5)
    lin = lambda a, w, b: jnp.matmul(a, w.T, precision=_HI) + b

    qkv = lin(x, params["in_proj_weight"], params["in_proj_bias"])
    x2d = _ref_attention(qkv.reshape(B * T, H * W, 3 * C), num_heads, scale)
    x2d = lin(x2d.reshape(B, N, C), params["out_proj_w"], params["out_proj_b"])

    xt = lin(x2d, params["in_proj_weight_t"], params["in_proj_bias_t"])
    xt4 = xt.reshape(B, T, H, W, 3 * C)

    x_th = jnp.transpose(xt4, (0, 3, 1, 2, 4)).reshape(B * W, T * H, 3 * C)
    x_th = _ref_attention(x_th, num_heads, scale)
    x_th = jnp.transpose(x_th.reshape(B, W, T, H, C), (0, 2, 3, 1, 4)).reshape(B, N, C)

    x_tw = jnp.transpose(xt4, (0, 2, 1, 3, 4)).reshape(B * H, T * W, 3 * C)
    x_tw = _ref_attention(x_tw, num_heads, scale)
    x_tw = jnp.transpose(x_tw.reshape(B, H, T, W, C), (0, 2, 1, 3, 4)).reshape(B, N, C)

    x_t = lin(x_th + x_tw, params["out_proj_t_w"], params["out_proj_t_b"])
    return x2d + x_t * params["alpha"]


# --------------------------------------------------------------------------
# Deterministic parameter init (shapes from Attention.__init__ / _reset_parameters)
# --------------------------------------------------------------------------

def init_params(key, embed_dim):
    C = embed_dim
    ks = jax.random.split(key, 4)

    def xavier_uniform(k, shape):
        fan_out, fan_in = shape
        bound = (6.0 / (fan_in + fan_out)) ** 0.5
        return jax.random.uniform(k, shape, jnp.float32, -bound, bound)

    def linear_weight(k, shape):
        fan_in = shape[1]
        bound = 1.0 / (fan_in ** 0.5)
        return jax.random.uniform(k, shape, jnp.float32, -bound, bound)

    return {
        "in_proj_weight": xavier_uniform(ks[0], (3 * C, C)),
        "in_proj_bias": jnp.zeros((3 * C,), jnp.float32),
        "out_proj_w": linear_weight(ks[1], (C, C)),
        "out_proj_b": jnp.zeros((C,), jnp.float32),
        "in_proj_weight_t": xavier_uniform(ks[2], (3 * C, C)),
        "in_proj_bias_t": jnp.zeros((3 * C,), jnp.float32),
        "out_proj_t_w": linear_weight(ks[3], (C, C)),
        "out_proj_t_b": jnp.zeros((C,), jnp.float32),
        "alpha": 1e-4 * jnp.ones((C,), jnp.float32),
    }


# --------------------------------------------------------------------------

if __name__ == "__main__":
    B, T, H, W = 2, 2, 4, 4
    C, num_heads = 32, 4
    N = T * H * W

    key = jax.random.PRNGKey(0)
    k_x, k_p = jax.random.split(key)
    x = jax.random.normal(k_x, (B, N, C), jnp.float32)
    params = init_params(k_p, C)

    fwd_exact = jax.jit(lambda xx, pp: attention_t2d_forward(
        xx, (T, H, W), pp, num_heads, fast_math=False))
    fwd_fast = jax.jit(lambda xx, pp: attention_t2d_forward(
        xx, (T, H, W), pp, num_heads, fast_math=True))

    out_exact = jax.block_until_ready(fwd_exact(x, params))
    out_fast = jax.block_until_ready(fwd_fast(x, params))

    ref = reference_t2d_forward(x, (T, H, W), params, num_heads)
    assert out_exact.shape == (B, N, C)
    assert jnp.allclose(out_exact, ref, atol=1e-4, rtol=1e-4), "f32 path mismatch"
    assert jnp.allclose(out_fast, ref, atol=5e-2, rtol=5e-2), "bf16 path mismatch"

    print("KERNEL_OK")
</pallas_src>

<mosaic_0001>
module attributes {stable_mosaic.version = 11 : i64} {
  func.func @_linear_kernel(%arg0: i32, %arg1: memref<64x32xf32, #tpu.memory_space<vmem>>, %arg2: memref<32x96xf32, #tpu.memory_space<vmem>>, %arg3: memref<1x96xf32, #tpu.memory_space<vmem>>, %arg4: memref<64x96xf32, #tpu.memory_space<vmem>>) attributes {dimension_semantics = [#tpu.dimension_semantics<parallel>], iteration_bounds = array<i64: 1>, scalar_prefetch = 0 : i64, scratch_operands = 0 : i64, tpu.core_type = #tpu.core_type<tc>, window_params = [{transform_indices = @transform_0, window_bounds = array<i64: 64, 32>}, {pipeline_mode = #tpu.pipeline_mode<synchronous>, transform_indices = @transform_1, window_bounds = array<i64: 32, 96>}, {pipeline_mode = #tpu.pipeline_mode<synchronous>, transform_indices = @transform_2, window_bounds = array<i64: 1, 96>}, {transform_indices = @transform_3, window_bounds = array<i64: 64, 96>}]} {
    %c0 = arith.constant 0 : index
    %c0_0 = arith.constant 0 : index
    %0 = vector.load %arg1[%c0, %c0_0] : memref<64x32xf32, #tpu.memory_space<vmem>>, vector<64x32xf32>
    %c0_1 = arith.constant 0 : index
    %c0_2 = arith.constant 0 : index
    %1 = vector.load %arg2[%c0_1, %c0_2] : memref<32x96xf32, #tpu.memory_space<vmem>>, vector<32x96xf32>
    %cst = arith.constant dense<0.000000e+00> : vector<64x96xf32>
    %2 = tpu.matmul %0, %1, %cst {dimension_numbers = #tpu.dot_dimension_numbers<[1], [0], [0], [1], [0, 0, 1, 1], [], []>} : vector<64x32xf32>, vector<32x96xf32>, vector<64x96xf32> -> vector<64x96xf32>
    %c0_3 = arith.constant 0 : index
    %c0_4 = arith.constant 0 : index
    %3 = vector.load %arg3[%c0_3, %c0_4] : memref<1x96xf32, #tpu.memory_space<vmem>>, vector<1x96xf32>
    %4 = vector.broadcast %3 : vector<1x96xf32> to vector<64x96xf32>
    %5 = arith.addf %2, %4 : vector<64x96xf32>
    %c0_5 = arith.constant 0 : index
    %c0_6 = arith.constant 0 : index
    %6 = vector.load %arg4[%c0_5, %c0_6] : memref<64x96xf32, #tpu.memory_space<vmem>>, vector<64x96xf32>
    tpu.vector_store %arg4[%c0_5, %c0_6], %5 {strides = array<i32>} : memref<64x96xf32, #tpu.memory_space<vmem>>, vector<64x96xf32>,
    return
  }
  func.func @transform_0(%arg0: i32) -> (i32, i32) {
    %c0_i32 = arith.constant 0 : i32
    %c0_i32_0 = arith.constant 0 : i32
    return %arg0, %c0_i32 : i32, i32
  }
  func.func @transform_1(%arg0: i32) -> (i32, i32) {
    %c0_i32 = arith.constant 0 : i32
    %c0_i32_0 = arith.constant 0 : i32
    %c0_i32_1 = arith.constant 0 : i32
    return %c0_i32, %c0_i32_0 : i32, i32
  }
  func.func @transform_2(%arg0: i32) -> (i32, i32) {
    %c0_i32 = arith.constant 0 : i32
    %c0_i32_0 = arith.constant 0 : i32
    %c0_i32_1 = arith.constant 0 : i32
    return %c0_i32, %c0_i32_0 : i32, i32
  }
  func.func @transform_3(%arg0: i32) -> (i32, i32) {
    %c0_i32 = arith.constant 0 : i32
    %c0_i32_0 = arith.constant 0 : i32
    return %arg0, %c0_i32 : i32, i32
  }
}

module attributes {stable_mosaic.version = 11 : i64} {
  func.func @_linear_kernel(%arg0: i32, %arg1: memref<64x32xf32, #tpu.memory_space<vmem>>, %arg2: memref<32x32xf32, #tpu.memory_space<vmem>>, %arg3: memref<1x32xf32, #tpu.memory_space<vmem>>, %arg4: memref<64x32xf32, #tpu.memory_space<vmem>>) attributes {dimension_semantics = [#tpu.dimension_semantics<parallel>], iteration_bounds = array<i64: 1>, scalar_prefetch = 0 : i64, scratch_operands = 0 : i64, tpu.core_type = #tpu.core_type<tc>, window_params = [{transform_indices = @transform_0, window_bounds = array<i64: 64, 32>}, {pipeline_mode = #tpu.pipeline_mode<synchronous>, transform_indices = @transform_1, window_bounds = array<i64: 32, 32>}, {pipeline_mode = #tpu.pipeline_mode<synchronous>, transform_indices = @transform_2, window_bounds = array<i64: 1, 32>}, {transform_indices = @transform_3, window_bounds = array<i64: 64, 32>}]} {
    %c0 = arith.constant 0 : index
    %c0_0 = arith.constant 0 : index
    %0 = vector.load %arg1[%c0, %c0_0] : memref<64x32xf32, #tpu.memory_space<vmem>>, vector<64x32xf32>
    %c0_1 = arith.constant 0 : index
    %c0_2 = arith.constant 0 : index
    %1 = vector.load %arg2[%c0_1, %c0_2] : memref<32x32xf32, #tpu.memory_space<vmem>>, vector<32x32xf32>
    %cst = arith.constant dense<0.000000e+00> : vector<64x32xf32>
    %2 = tpu.matmul %0, %1, %cst {dimension_numbers = #tpu.dot_dimension_numbers<[1], [0], [0], [1], [0, 0, 1, 1], [], []>} : vector<64x32xf32>, vector<32x32xf32>, vector<64x32xf32> -> vector<64x32xf32>
    %c0_3 = arith.constant 0 : index
    %c0_4 = arith.constant 0 : index
    %3 = vector.load %arg3[%c0_3, %c0_4] : memref<1x32xf32, #tpu.memory_space<vmem>>, vector<1x32xf32>
    %4 = vector.broadcast %3 : vector<1x32xf32> to vector<64x32xf32>
    %5 = arith.addf %2, %4 : vector<64x32xf32>
    %c0_5 = arith.constant 0 : index
    %c0_6 = arith.constant 0 : index
    %6 = vector.load %arg4[%c0_5, %c0_6] : memref<64x32xf32, #tpu.memory_space<vmem>>, vector<64x32xf32>
    tpu.vector_store %arg4[%c0_5, %c0_6], %5 {strides = array<i32>} : memref<64x32xf32, #tpu.memory_space<vmem>>, vector<64x32xf32>,
    return
  }
  func.func @transform_0(%arg0: i32) -> (i32, i32) {
    %c0_i32 = arith.constant 0 : i32
    %c0_i32_0 = arith.constant 0 : i32
    return %arg0, %c0_i32 : i32, i32
  }
  func.func @transform_1(%arg0: i32) -> (i32, i32) {
    %c0_i32 = arith.constant 0 : i32
    %c0_i32_0 = arith.constant 0 : i32
    %c0_i32_1 = arith.constant 0 : i32
    return %c0_i32, %c0_i32_0 : i32, i32
  }
  func.func @transform_2(%arg0: i32) -> (i32, i32) {
    %c0_i32 = arith.constant 0 : i32
    %c0_i32_0 = arith.constant 0 : i32
    %c0_i32_1 = arith.constant 0 : i32
    return %c0_i32, %c0_i32_0 : i32, i32
  }
  func.func @transform_3(%arg0: i32) -> (i32, i32) {
    %c0_i32 = arith.constant 0 : i32
    %c0_i32_0 = arith.constant 0 : i32
    return %arg0, %c0_i32 : i32, i32
  }
}

module attributes {stable_mosaic.version = 11 : i64} {
  func.func @_mha_flash_kernel(%arg0: i32, %arg1: i32, %arg2: i32, %arg3: memref<1x1x16x8xf32, #tpu.memory_space<vmem>>, %arg4: memref<1x1x16x8xf32, #tpu.memory_space<vmem>>, %arg5: memref<1x1x16x8xf32, #tpu.memory_space<vmem>>, %arg6: memref<1x1x16x8xf32, #tpu.memory_space<vmem>>, %arg7: memref<16x1xf32, #tpu.memory_space<vmem>>, %arg8: memref<16x1xf32, #tpu.memory_space<vmem>>, %arg9: memref<16x8xf32, #tpu.memory_space<vmem>>) attributes {dimension_semantics = [#tpu.dimension_semantics<parallel>, #tpu.dimension_semantics<parallel>, #tpu.dimension_semantics<arbitrary>], iteration_bounds = array<i64: 4, 4, 1>, scalar_prefetch = 0 : i64, scratch_operands = 3 : i64, tpu.core_type = #tpu.core_type<tc>, window_params = [{transform_indices = @transform_0, window_bounds = array<i64: 1, 1, 16, 8>}, {transform_indices = @transform_1, window_bounds = array<i64: 1, 1, 16, 8>}, {transform_indices = @transform_2, window_bounds = array<i64: 1, 1, 16, 8>}, {transform_indices = @transform_3, window_bounds = array<i64: 1, 1, 16, 8>}]} {
    %c0_i32 = arith.constant 0 : i32
    %0 = arith.cmpi eq, %arg2, %c0_i32 : i32
    %1 = arith.extui %0 : i1 to i32
    %c0_i32_0 = arith.constant 0 : i32
    %2 = arith.cmpi ne, %1, %c0_i32_0 : i32
    scf.if %2 {
      %cst_30 = arith.constant 0xFF800000 : f32
      %37 = vector.broadcast %cst_30 : f32 to vector<16x1xf32>
      %c0_31 = arith.constant 0 : index
      %c0_32 = arith.constant 0 : index
      %38 = vector.load %arg7[%c0_31, %c0_32] : memref<16x1xf32, #tpu.memory_space<vmem>>, vector<16x1xf32>
      tpu.vector_store %arg7[%c0_31, %c0_32], %37 {strides = array<i32>} : memref<16x1xf32, #tpu.memory_space<vmem>>, vector<16x1xf32>,
      %cst_33 = arith.constant 0.000000e+00 : f32
      %39 = vector.broadcast %cst_33 : f32 to vector<16x1xf32>
      %c0_34 = arith.constant 0 : index
      %c0_35 = arith.constant 0 : index
      %40 = vector.load %arg8[%c0_34, %c0_35] : memref<16x1xf32, #tpu.memory_space<vmem>>, vector<16x1xf32>
      tpu.vector_store %arg8[%c0_34, %c0_35], %39 {strides = array<i32>} : memref<16x1xf32, #tpu.memory_space<vmem>>, vector<16x1xf32>,
      %cst_36 = arith.constant 0.000000e+00 : f32
      %41 = vector.broadcast %cst_36 : f32 to vector<16x8xf32>
      %c0_37 = arith.constant 0 : index
      %c0_38 = arith.constant 0 : index
      %42 = vector.load %arg9[%c0_37, %c0_38] : memref<16x8xf32, #tpu.memory_space<vmem>>, vector<16x8xf32>
      tpu.vector_store %arg9[%c0_37, %c0_38], %41 {strides = array<i32>} : memref<16x8xf32, #tpu.memory_space<vmem>>, vector<16x8xf32>,
    } else {
    }
    %c0 = arith.constant 0 : index
    %c0_1 = arith.constant 0 : index
    %c0_2 = arith.constant 0 : index
    %c0_3 = arith.constant 0 : index
    %3 = vector.load %arg3[%c0, %c0_1, %c0_2, %c0_3] : memref<1x1x16x8xf32, #tpu.memory_space<vmem>>, vector<1x1x16x8xf32>
    %4 = vector.shape_cast %3 : vector<1x1x16x8xf32> to vector<16x8xf32>
    %cst = arith.constant 0.353553385 : f32
    %5 = vector.broadcast %cst : f32 to vector<16x8xf32>
    %6 = arith.mulf %4, %5 : vector<16x8xf32>
    %c0_4 = arith.constant 0 : index
    %c0_5 = arith.constant 0 : index
    %c0_6 = arith.constant 0 : index
    %c0_7 = arith.constant 0 : index
    %7 = vector.load %arg4[%c0_4, %c0_5, %c0_6, %c0_7] : memref<1x1x16x8xf32, #tpu.memory_space<vmem>>, vector<1x1x16x8xf32>
    %8 = vector.shape_cast %7 : vector<1x1x16x8xf32> to vector<16x8xf32>
    %c0_8 = arith.constant 0 : index
    %c0_9 = arith.constant 0 : index
    %c0_10 = arith.constant 0 : index
    %c0_11 = arith.constant 0 : index
    %9 = vector.load %arg5[%c0_8, %c0_9, %c0_10, %c0_11] : memref<1x1x16x8xf32, #tpu.memory_space<vmem>>, vector<1x1x16x8xf32>
    %10 = vector.shape_cast %9 : vector<1x1x16x8xf32> to vector<16x8xf32>
    %cst_12 = arith.constant dense<0.000000e+00> : vector<16x16xf32>
    %11 = tpu.matmul %6, %8, %cst_12 {dimension_numbers = #tpu.dot_dimension_numbers<[1], [1], [0], [0], [0, 0, 1, 0], [], []>} : vector<16x8xf32>, vector<16x8xf32>, vector<16x16xf32> -> vector<16x16xf32>
    %c0_13 = arith.constant 0 : index
    %c0_14 = arith.constant 0 : index
    %12 = vector.load %arg7[%c0_13, %c0_14] : memref<16x1xf32, #tpu.memory_space<vmem>>, vector<16x1xf32>
    %cst_15 = arith.constant dense<0xFF800000> : vector<16xf32>
    %13 = vector.multi_reduction <maximumf>, %11, %cst_15 [1] : vector<16x16xf32> to vector<16xf32>
    %14 = vector.shape_cast %13 : vector<16xf32> to vector<16x1xf32>
    %15 = arith.maximumf %12, %14 : vector<16x1xf32>
    %16 = arith.subf %12, %15 : vector<16x1xf32>
    %17 = math.exp %16 : vector<16x1xf32>
    %18 = vector.broadcast %15 : vector<16x1xf32> to vector<16x16xf32>
    %19 = arith.subf %11, %18 : vector<16x16xf32>
    %20 = math.exp %19 : vector<16x16xf32>
    %c0_16 = arith.constant 0 : index
    %c0_17 = arith.constant 0 : index
    %21 = vector.load %arg8[%c0_16, %c0_17] : memref<16x1xf32, #tpu.memory_space<vmem>>, vector<16x1xf32>
    %22 = arith.mulf %17, %21 : vector<16x1xf32>
    %cst_18 = arith.constant dense<0.000000e+00> : vector<16xf32>
    %23 = vector.multi_reduction <add>, %20, %cst_18 [1] : vector<16x16xf32> to vector<16xf32>
    %24 = vector.shape_cast %23 : vector<16xf32> to vector<16x1xf32>
    %25 = arith.addf %22, %24 : vector<16x1xf32>
    %c0_19 = arith.constant 0 : index
    %c0_20 = arith.constant 0 : index
    %26 = vector.load %arg8[%c0_19, %c0_20] : memref<16x1xf32, #tpu.memory_space<vmem>>, vector<16x1xf32>
    tpu.vector_store %arg8[%c0_19, %c0_20], %25 {strides = array<i32>} : memref<16x1xf32, #tpu.memory_space<vmem>>, vector<16x1xf32>,
    %c0_21 = arith.constant 0 : index
    %c0_22 = arith.constant 0 : index
    %27 = vector.load %arg9[%c0_21, %c0_22] : memref<16x8xf32, #tpu.memory_space<vmem>>, vector<16x8xf32>
    %28 = vector.broadcast %17 : vector<16x1xf32> to vector<16x8xf32>
    %29 = arith.mulf %28, %27 : vector<16x8xf32>
    %cst_23 = arith.constant dense<0.000000e+00> : vector<16x8xf32>
    %30 = tpu.matmul %20, %10, %cst_23 {dimension_numbers = #tpu.dot_dimension_numbers<[1], [0], [0], [1], [0, 0, 1, 1], [], []>} : vector<16x16xf32>, vector<16x8xf32>, vector<16x8xf32> -> vector<16x8xf32>
    %31 = arith.addf %29, %30 : vector<16x8xf32>
    %c0_24 = arith.constant 0 : index
    %c0_25 = arith.constant 0 : index
    %32 = vector.load %arg9[%c0_24, %c0_25] : memref<16x8xf32, #tpu.memory_space<vmem>>, vector<16x8xf32>
    tpu.vector_store %arg9[%c0_24, %c0_25], %31 {strides = array<i32>} : memref<16x8xf32, #tpu.memory_space<vmem>>, vector<16x8xf32>,
    %c0_26 = arith.constant 0 : index
    %c0_27 = arith.constant 0 : index
    %33 = vector.load %arg7[%c0_26, %c0_27] : memref<16x1xf32, #tpu.memory_space<vmem>>, vector<16x1xf32>
    tpu.vector_store %arg7[%c0_26, %c0_27], %15 {strides = array<i32>} : memref<16x1xf32, #tpu.memory_space<vmem>>, vector<16x1xf32>,
    %c0_i32_28 = arith.constant 0 : i32
    %34 = arith.cmpi eq, %arg2, %c0_i32_28 : i32
    %35 = arith.extui %34 : i1 to i32
    %c0_i32_29 = arith.constant 0 : i32
    %36 = arith.cmpi ne, %35, %c0_i32_29 : i32
    scf.if %36 {
      %c0_30 = arith.constant 0 : index
      %c0_31 = arith.constant 0 : index
      %37 = vector.load %arg8[%c0_30, %c0_31] : memref<16x1xf32, #tpu.memory_space<vmem>>, vector<16x1xf32>
      %38 = tpu.reciprocal %37 : vector<16x1xf32> -> vector<16x1xf32>
      %c0_32 = arith.constant 0 : index
      %c0_33 = arith.constant 0 : index
      %39 = vector.load %arg9[%c0_32, %c0_33] : memref<16x8xf32, #tpu.memory_space<vmem>>, vector<16x8xf32>
      %40 = vector.broadcast %38 : vector<16x1xf32> to vector<16x8xf32>
      %41 = arith.mulf %39, %40 : vector<16x8xf32>
      %c0_34 = arith.constant 0 : index
      %c0_35 = arith.constant 0 : index
      %c0_36 = arith.constant 0 : index
      %c0_37 = arith.constant 0 : index
      %42 = vector.load %arg6[%c0_34, %c0_35, %c0_36, %c0_37] : memref<1x1x16x8xf32, #tpu.memory_space<vmem>>, vector<1x1x16x8xf32>
      %43 = vector.shape_cast %42 : vector<1x1x16x8xf32> to vector<16x8xf32>
      %44 = vector.shape_cast %41 : vector<16x8xf32> to vector<1x1x16x8xf32>
      tpu.vector_store %arg6[%c0_34, %c0_35, %c0_36, %c0_37], %44 {strides = array<i32>} : memref<1x1x16x8xf32, #tpu.memory_space<vmem>>, vector<1x1x16x8xf32>,
    } else {
    }
    return
  }
  func.func @transform_0(%arg0: i32, %arg1: i32, %arg2: i32) -> (i32, i32, i32, i32) {
    %c0_i32 = arith.constant 0 : i32
    %c0_i32_0 = arith.constant 0 : i32
    %c0_i32_1 = arith.constant 0 : i32
    return %arg0, %arg1, %c0_i32, %c0_i32_0 : i32, i32, i32, i32
  }
  func.func @transform_1(%arg0: i32, %arg1: i32, %arg2: i32) -> (i32, i32, i32, i32) {
    %c0_i32 = arith.constant 0 : i32
    %c0_i32_0 = arith.constant 0 : i32
    return %arg0, %arg1, %arg2, %c0_i32 : i32, i32, i32, i32
  }
  func.func @transform_2(%arg0: i32, %arg1: i32, %arg2: i32) -> (i32, i32, i32, i32) {
    %c0_i32 = arith.constant 0 : i32
    %c0_i32_0 = arith.constant 0 : i32
    return %arg0, %arg1, %arg2, %c0_i32 : i32, i32, i32, i32
  }
  func.func @transform_3(%arg0: i32, %arg1: i32, %arg2: i32) -> (i32, i32, i32, i32) {
    %c0_i32 = arith.constant 0 : i32
    %c0_i32_0 = arith.constant 0 : i32
    %c0_i32_1 = arith.constant 0 : i32
    return %arg0, %arg1, %c0_i32, %c0_i32_0 : i32, i32, i32, i32
  }
}

module attributes {stable_mosaic.version = 11 : i64} {
  func.func @_linear_kernel(%arg0: i32, %arg1: memref<64x32xf32, #tpu.memory_space<vmem>>, %arg2: memref<32x96xf32, #tpu.memory_space<vmem>>, %arg3: memref<1x96xf32, #tpu.memory_space<vmem>>, %arg4: memref<64x96xf32, #tpu.memory_space<vmem>>) attributes {dimension_semantics = [#tpu.dimension_semantics<parallel>], iteration_bounds = array<i64: 1>, scalar_prefetch = 0 : i64, scratch_operands = 0 : i64, tpu.core_type = #tpu.core_type<tc>, window_params = [{transform_indices = @transform_0, window_bounds = array<i64: 64, 32>}, {pipeline_mode = #tpu.pipeline_mode<synchronous>, transform_indices = @transform_1, window_bounds = array<i64: 32, 96>}, {pipeline_mode = #tpu.pipeline_mode<synchronous>, transform_indices = @transform_2, window_bounds = array<i64: 1, 96>}, {transform_indices = @transform_3, window_bounds = array<i64: 64, 96>}]} {
    %c0 = arith.constant 0 : index
    %c0_0 = arith.constant 0 : index
    %0 = vector.load %arg1[%c0, %c0_0] : memref<64x32xf32, #tpu.memory_space<vmem>>, vector<64x32xf32>
    %c0_1 = arith.constant 0 : index
    %c0_2 = arith.constant 0 : index
    %1 = vector.load %arg2[%c0_1, %c0_2] : memref<32x96xf32, #tpu.memory_space<vmem>>, vector<32x96xf32>
    %cst = arith.constant dense<0.000000e+00> : vector<64x96xf32>
    %2 = tpu.matmul %0, %1, %cst {dimension_numbers = #tpu.dot_dimension_numbers<[1], [0], [0], [1], [0, 0, 1, 1], [], []>} : vector<64x32xf32>, vector<32x96xf32>, vector<64x96xf32> -> vector<64x96xf32>
    %c0_3 = arith.constant 0 : index
    %c0_4 = arith.constant 0 : index
    %3 = vector.load %arg3[%c0_3, %c0_4] : memref<1x96xf32, #tpu.memory_space<vmem>>, vector<1x96xf32>
    %4 = vector.broadcast %3 : vector<1x96xf32> to vector<64x96xf32>
    %5 = arith.addf %2, %4 : vector<64x96xf32>
    %c0_5 = arith.constant 0 : index
    %c0_6 = arith.constant 0 : index
    %6 = vector.load %arg4[%c0_5, %c0_6] : memref<64x96xf32, #tpu.memory_space<vmem>>, vector<64x96xf32>
    tpu.vector_store %arg4[%c0_5, %c0_6], %5 {strides = array<i32>} : memref<64x96xf32, #tpu.memory_space<vmem>>, vector<64x96xf32>,
    return
  }
  func.func @transform_0(%arg0: i32) -> (i32, i32) {
    %c0_i32 = arith.constant 0 : i32
    %c0_i32_0 = arith.constant 0 : i32
    return %arg0, %c0_i32 : i32, i32
  }
  func.func @transform_1(%arg0: i32) -> (i32, i32) {
    %c0_i32 = arith.constant 0 : i32
    %c0_i32_0 = arith.constant 0 : i32
    %c0_i32_1 = arith.constant 0 : i32
    return %c0_i32, %c0_i32_0 : i32, i32
  }
  func.func @transform_2(%arg0: i32) -> (i32, i32) {
    %c0_i32 = arith.constant 0 : i32
    %c0_i32_0 = arith.constant 0 : i32
    %c0_i32_1 = arith.constant 0 : i32
    return %c0_i32, %c0_i32_0 : i32, i32
  }
  func.func @transform_3(%arg0: i32) -> (i32, i32) {
    %c0_i32 = arith.constant 0 : i32
    %c0_i32_0 = arith.constant 0 : i32
    return %arg0, %c0_i32 : i32, i32
  }
}

module attributes {stable_mosaic.version = 11 : i64} {
  func.func @_mha_flash_kernel(%arg0: i32, %arg1: i32, %arg2: i32, %arg3: memref<1x1x8x8xf32, #tpu.memory_space<vmem>>, %arg4: memref<1x1x8x8xf32, #tpu.memory_space<vmem>>, %arg5: memref<1x1x8x8xf32, #tpu.memory_space<vmem>>, %arg6: memref<1x1x8x8xf32, #tpu.memory_space<vmem>>, %arg7: memref<8x1xf32, #tpu.memory_space<vmem>>, %arg8: memref<8x1xf32, #tpu.memory_space<vmem>>, %arg9: memref<8x8xf32, #tpu.memory_space<vmem>>) attributes {dimension_semantics = [#tpu.dimension_semantics<parallel>, #tpu.dimension_semantics<parallel>, #tpu.dimension_semantics<arbitrary>], iteration_bounds = array<i64: 8, 4, 1>, scalar_prefetch = 0 : i64, scratch_operands = 3 : i64, tpu.core_type = #tpu.core_type<tc>, window_params = [{transform_indices = @transform_0, window_bounds = array<i64: 1, 1, 8, 8>}, {transform_indices = @transform_1, window_bounds = array<i64: 1, 1, 8, 8>}, {transform_indices = @transform_2, window_bounds = array<i64: 1, 1, 8, 8>}, {transform_indices = @transform_3, window_bounds = array<i64: 1, 1, 8, 8>}]} {
    %c0_i32 = arith.constant 0 : i32
    %0 = arith.cmpi eq, %arg2, %c0_i32 : i32
    %1 = arith.extui %0 : i1 to i32
    %c0_i32_0 = arith.constant 0 : i32
    %2 = arith.cmpi ne, %1, %c0_i32_0 : i32
    scf.if %2 {
      %cst_30 = arith.constant 0xFF800000 : f32
      %37 = vector.broadcast %cst_30 : f32 to vector<8x1xf32>
      %c0_31 = arith.constant 0 : index
      %c0_32 = arith.constant 0 : index
      %38 = vector.load %arg7[%c0_31, %c0_32] : memref<8x1xf32, #tpu.memory_space<vmem>>, vector<8x1xf32>
      tpu.vector_store %arg7[%c0_31, %c0_32], %37 {strides = array<i32>} : memref<8x1xf32, #tpu.memory_space<vmem>>, vector<8x1xf32>,
      %cst_33 = arith.constant 0.000000e+00 : f32
      %39 = vector.broadcast %cst_33 : f32 to vector<8x1xf32>
      %c0_34 = arith.constant 0 : index
      %c0_35 = arith.constant 0 : index
      %40 = vector.load %arg8[%c0_34, %c0_35] : memref<8x1xf32, #tpu.memory_space<vmem>>, vector<8x1xf32>
      tpu.vector_store %arg8[%c0_34, %c0_35], %39 {strides = array<i32>} : memref<8x1xf32, #tpu.memory_space<vmem>>, vector<8x1xf32>,
      %cst_36 = arith.constant 0.000000e+00 : f32
      %41 = vector.broadcast %cst_36 : f32 to vector<8x8xf32>
      %c0_37 = arith.constant 0 : index
      %c0_38 = arith.constant 0 : index
      %42 = vector.load %arg9[%c0_37, %c0_38] : memref<8x8xf32, #tpu.memory_space<vmem>>, vector<8x8xf32>
      tpu.vector_store %arg9[%c0_37, %c0_38], %41 {strides = array<i32>} : memref<8x8xf32, #tpu.memory_space<vmem>>, vector<8x8xf32>,
    } else {
    }
    %c0 = arith.constant 0 : index
    %c0_1 = arith.constant 0 : index
    %c0_2 = arith.constant 0 : index
    %c0_3 = arith.constant 0 : index
    %3 = vector.load %arg3[%c0, %c0_1, %c0_2, %c0_3] : memref<1x1x8x8xf32, #tpu.memory_space<vmem>>, vector<1x1x8x8xf32>
    %4 = vector.shape_cast %3 : vector<1x1x8x8xf32> to vector<8x8xf32>
    %cst = arith.constant 0.353553385 : f32
    %5 = vector.broadcast %cst : f32 to vector<8x8xf32>
    %6 = arith.mulf %4, %5 : vector<8x8xf32>
    %c0_4 = arith.constant 0 : index
    %c0_5 = arith.constant 0 : index
    %c0_6 = arith.constant 0 : index
    %c0_7 = arith.constant 0 : index
    %7 = vector.load %arg4[%c0_4, %c0_5, %c0_6, %c0_7] : memref<1x1x8x8xf32, #tpu.memory_space<vmem>>, vector<1x1x8x8xf32>
    %8 = vector.shape_cast %7 : vector<1x1x8x8xf32> to vector<8x8xf32>
    %c0_8 = arith.constant 0 : index
    %c0_9 = arith.constant 0 : index
    %c0_10 = arith.constant 0 : index
    %c0_11 = arith.constant 0 : index
    %9 = vector.load %arg5[%c0_8, %c0_9, %c0_10, %c0_11] : memref<1x1x8x8xf32, #tpu.memory_space<vmem>>, vector<1x1x8x8xf32>
    %10 = vector.shape_cast %9 : vector<1x1x8x8xf32> to vector<8x8xf32>
    %cst_12 = arith.constant dense<0.000000e+00> : vector<8x8xf32>
    %11 = tpu.matmul %6, %8, %cst_12 {dimension_numbers = #tpu.dot_dimension_numbers<[1], [1], [0], [0], [0, 0, 1, 0], [], []>} : vector<8x8xf32>, vector<8x8xf32>, vector<8x8xf32> -> vector<8x8xf32>
    %c0_13 = arith.constant 0 : index
    %c0_14 = arith.constant 0 : index
    %12 = vector.load %arg7[%c0_13, %c0_14] : memref<8x1xf32, #tpu.memory_space<vmem>>, vector<8x1xf32>
    %cst_15 = arith.constant dense<0xFF800000> : vector<8xf32>
    %13 = vector.multi_reduction <maximumf>, %11, %cst_15 [1] : vector<8x8xf32> to vector<8xf32>
    %14 = vector.shape_cast %13 : vector<8xf32> to vector<8x1xf32>
    %15 = arith.maximumf %12, %14 : vector<8x1xf32>
    %16 = arith.subf %12, %15 : vector<8x1xf32>
    %17 = math.exp %16 : vector<8x1xf32>
    %18 = vector.broadcast %15 : vector<8x1xf32> to vector<8x8xf32>
    %19 = arith.subf %11, %18 : vector<8x8xf32>
    %20 = math.exp %19 : vector<8x8xf32>
    %c0_16 = arith.constant 0 : index
    %c0_17 = arith.constant 0 : index
    %21 = vector.load %arg8[%c0_16, %c0_17] : memref<8x1xf32, #tpu.memory_space<vmem>>, vector<8x1xf32>
    %22 = arith.mulf %17, %21 : vector<8x1xf32>
    %cst_18 = arith.constant dense<0.000000e+00> : vector<8xf32>
    %23 = vector.multi_reduction <add>, %20, %cst_18 [1] : vector<8x8xf32> to vector<8xf32>
    %24 = vector.shape_cast %23 : vector<8xf32> to vector<8x1xf32>
    %25 = arith.addf %22, %24 : vector<8x1xf32>
    %c0_19 = arith.constant 0 : index
    %c0_20 = arith.constant 0 : index
    %26 = vector.load %arg8[%c0_19, %c0_20] : memref<8x1xf32, #tpu.memory_space<vmem>>, vector<8x1xf32>
    tpu.vector_store %arg8[%c0_19, %c0_20], %25 {strides = array<i32>} : memref<8x1xf32, #tpu.memory_space<vmem>>, vector<8x1xf32>,
    %c0_21 = arith.constant 0 : index
    %c0_22 = arith.constant 0 : index
    %27 = vector.load %arg9[%c0_21, %c0_22] : memref<8x8xf32, #tpu.memory_space<vmem>>, vector<8x8xf32>
    %28 = vector.broadcast %17 : vector<8x1xf32> to vector<8x8xf32>
    %29 = arith.mulf %28, %27 : vector<8x8xf32>
    %cst_23 = arith.constant dense<0.000000e+00> : vector<8x8xf32>
    %30 = tpu.matmul %20, %10, %cst_23 {dimension_numbers = #tpu.dot_dimension_numbers<[1], [0], [0], [1], [0, 0, 1, 1], [], []>} : vector<8x8xf32>, vector<8x8xf32>, vector<8x8xf32> -> vector<8x8xf32>
    %31 = arith.addf %29, %30 : vector<8x8xf32>
    %c0_24 = arith.constant 0 : index
    %c0_25 = arith.constant 0 : index
    %32 = vector.load %arg9[%c0_24, %c0_25] : memref<8x8xf32, #tpu.memory_space<vmem>>, vector<8x8xf32>
    tpu.vector_store %arg9[%c0_24, %c0_25], %31 {strides = array<i32>} : memref<8x8xf32, #tpu.memory_space<vmem>>, vector<8x8xf32>,
    %c0_26 = arith.constant 0 : index
    %c0_27 = arith.constant 0 : index
    %33 = vector.load %arg7[%c0_26, %c0_27] : memref<8x1xf32, #tpu.memory_space<vmem>>, vector<8x1xf32>
    tpu.vector_store %arg7[%c0_26, %c0_27], %15 {strides = array<i32>} : memref<8x1xf32, #tpu.memory_space<vmem>>, vector<8x1xf32>,
    %c0_i32_28 = arith.constant 0 : i32
    %34 = arith.cmpi eq, %arg2, %c0_i32_28 : i32
    %35 = arith.extui %34 : i1 to i32
    %c0_i32_29 = arith.constant 0 : i32
    %36 = arith.cmpi ne, %35, %c0_i32_29 : i32
    scf.if %36 {
      %c0_30 = arith.constant 0 : index
      %c0_31 = arith.constant 0 : index
      %37 = vector.load %arg8[%c0_30, %c0_31] : memref<8x1xf32, #tpu.memory_space<vmem>>, vector<8x1xf32>
      %38 = tpu.reciprocal %37 : vector<8x1xf32> -> vector<8x1xf32>
      %c0_32 = arith.constant 0 : index
      %c0_33 = arith.constant 0 : index
      %39 = vector.load %arg9[%c0_32, %c0_33] : memref<8x8xf32, #tpu.memory_space<vmem>>, vector<8x8xf32>
      %40 = vector.broadcast %38 : vector<8x1xf32> to vector<8x8xf32>
      %41 = arith.mulf %39, %40 : vector<8x8xf32>
      %c0_34 = arith.constant 0 : index
      %c0_35 = arith.constant 0 : index
      %c0_36 = arith.constant 0 : index
      %c0_37 = arith.constant 0 : index
      %42 = vector.load %arg6[%c0_34, %c0_35, %c0_36, %c0_37] : memref<1x1x8x8xf32, #tpu.memory_space<vmem>>, vector<1x1x8x8xf32>
      %43 = vector.shape_cast %42 : vector<1x1x8x8xf32> to vector<8x8xf32>
      %44 = vector.shape_cast %41 : vector<8x8xf32> to vector<1x1x8x8xf32>
      tpu.vector_store %arg6[%c0_34, %c0_35, %c0_36, %c0_37], %44 {strides = array<i32>} : memref<1x1x8x8xf32, #tpu.memory_space<vmem>>, vector<1x1x8x8xf32>,
    } else {
    }
    return
  }
  func.func @transform_0(%arg0: i32, %arg1: i32, %arg2: i32) -> (i32, i32, i32, i32) {
    %c0_i32 = arith.constant 0 : i32
    %c0_i32_0 = arith.constant 0 : i32
    %c0_i32_1 = arith.constant 0 : i32
    return %arg0, %arg1, %c0_i32, %c0_i32_0 : i32, i32, i32, i32
  }
  func.func @transform_1(%arg0: i32, %arg1: i32, %arg2: i32) -> (i32, i32, i32, i32) {
    %c0_i32 = arith.constant 0 : i32
    %c0_i32_0 = arith.constant 0 : i32
    return %arg0, %arg1, %arg2, %c0_i32 : i32, i32, i32, i32
  }
  func.func @transform_2(%arg0: i32, %arg1: i32, %arg2: i32) -> (i32, i32, i32, i32) {
    %c0_i32 = arith.constant 0 : i32
    %c0_i32_0 = arith.constant 0 : i32
    return %arg0, %arg1, %arg2, %c0_i32 : i32, i32, i32, i32
  }
  func.func @transform_3(%arg0: i32, %arg1: i32, %arg2: i32) -> (i32, i32, i32, i32) {
    %c0_i32 = arith.constant 0 : i32
    %c0_i32_0 = arith.constant 0 : i32
    %c0_i32_1 = arith.constant 0 : i32
    return %arg0, %arg1, %c0_i32, %c0_i32_0 : i32, i32, i32, i32
  }
}

module attributes {stable_mosaic.version = 11 : i64} {
  func.func @_linear_sum_residual_kernel(%arg0: i32, %arg1: memref<64x32xf32, #tpu.memory_space<vmem>>, %arg2: memref<64x32xf32, #tpu.memory_space<vmem>>, %arg3: memref<32x32xf32, #tpu.memory_space<vmem>>, %arg4: memref<1x32xf32, #tpu.memory_space<vmem>>, %arg5: memref<1x32xf32, #tpu.memory_space<vmem>>, %arg6: memref<64x32xf32, #tpu.memory_space<vmem>>, %arg7: memref<64x32xf32, #tpu.memory_space<vmem>>) attributes {dimension_semantics = [#tpu.dimension_semantics<parallel>], iteration_bounds = array<i64: 1>, scalar_prefetch = 0 : i64, scratch_operands = 0 : i64, tpu.core_type = #tpu.core_type<tc>, window_params = [{transform_indices = @transform_0, window_bounds = array<i64: 64, 32>}, {transform_indices = @transform_1, window_bounds = array<i64: 64, 32>}, {pipeline_mode = #tpu.pipeline_mode<synchronous>, transform_indices = @transform_2, window_bounds = array<i64: 32, 32>}, {pipeline_mode = #tpu.pipeline_mode<synchronous>, transform_indices = @transform_3, window_bounds = array<i64: 1, 32>}, {pipeline_mode = #tpu.pipeline_mode<synchronous>, transform_indices = @transform_4, window_bounds = array<i64: 1, 32>}, {transform_indices = @transform_5, window_bounds = array<i64: 64, 32>}, {transform_indices = @transform_6, window_bounds = array<i64: 64, 32>}]} {
    %c0 = arith.constant 0 : index
    %c0_0 = arith.constant 0 : index
    %0 = vector.load %arg1[%c0, %c0_0] : memref<64x32xf32, #tpu.memory_space<vmem>>, vector<64x32xf32>
    %c0_1 = arith.constant 0 : index
    %c0_2 = arith.constant 0 : index
    %1 = vector.load %arg2[%c0_1, %c0_2] : memref<64x32xf32, #tpu.memory_space<vmem>>, vector<64x32xf32>
    %2 = arith.addf %0, %1 : vector<64x32xf32>
    %c0_3 = arith.constant 0 : index
    %c0_4 = arith.constant 0 : index
    %3 = vector.load %arg3[%c0_3, %c0_4] : memref<32x32xf32, #tpu.memory_space<vmem>>, vector<32x32xf32>
    %cst = arith.constant dense<0.000000e+00> : vector<64x32xf32>
    %4 = tpu.matmul %2, %3, %cst {dimension_numbers = #tpu.dot_dimension_numbers<[1], [0], [0], [1], [0, 0, 1, 1], [], []>} : vector<64x32xf32>, vector<32x32xf32>, vector<64x32xf32> -> vector<64x32xf32>
    %c0_5 = arith.constant 0 : index
    %c0_6 = arith.constant 0 : index
    %5 = vector.load %arg4[%c0_5, %c0_6] : memref<1x32xf32, #tpu.memory_space<vmem>>, vector<1x32xf32>
    %6 = vector.broadcast %5 : vector<1x32xf32> to vector<64x32xf32>
    %7 = arith.addf %4, %6 : vector<64x32xf32>
    %c0_7 = arith.constant 0 : index
    %c0_8 = arith.constant 0 : index
    %8 = vector.load %arg6[%c0_7, %c0_8] : memref<64x32xf32, #tpu.memory_space<vmem>>, vector<64x32xf32>
    %c0_9 = arith.constant 0 : index
    %c0_10 = arith.constant 0 : index
    %9 = vector.load %arg5[%c0_9, %c0_10] : memref<1x32xf32, #tpu.memory_space<vmem>>, vector<1x32xf32>
    %10 = vector.broadcast %9 : vector<1x32xf32> to vector<64x32xf32>
    %11 = arith.mulf %7, %10 : vector<64x32xf32>
    %12 = arith.addf %8, %11 : vector<64x32xf32>
    %c0_11 = arith.constant 0 : index
    %c0_12 = arith.constant 0 : index
    %13 = vector.load %arg7[%c0_11, %c0_12] : memref<64x32xf32, #tpu.memory_space<vmem>>, vector<64x32xf32>
    tpu.vector_store %arg7[%c0_11, %c0_12], %12 {strides = array<i32>} : memref<64x32xf32, #tpu.memory_space<vmem>>, vector<64x32xf32>,
    return
  }
  func.func @transform_0(%arg0: i32) -> (i32, i32) {
    %c0_i32 = arith.constant 0 : i32
    %c0_i32_0 = arith.constant 0 : i32
    return %arg0, %c0_i32 : i32, i32
  }
  func.func @transform_1(%arg0: i32) -> (i32, i32) {
    %c0_i32 = arith.constant 0 : i32
    %c0_i32_0 = arith.constant 0 : i32
    return %arg0, %c0_i32 : i32, i32
  }
  func.func @transform_2(%arg0: i32) -> (i32, i32) {
    %c0_i32 = arith.constant 0 : i32
    %c0_i32_0 = arith.constant 0 : i32
    %c0_i32_1 = arith.constant 0 : i32
    return %c0_i32, %c0_i32_0 : i32, i32
  }
  func.func @transform_3(%arg0: i32) -> (i32, i32) {
    %c0_i32 = arith.constant 0 : i32
    %c0_i32_0 = arith.constant 0 : i32
    %c0_i32_1 = arith.constant 0 : i32
    return %c0_i32, %c0_i32_0 : i32, i32
  }
  func.func @transform_4(%arg0: i32) -> (i32, i32) {
    %c0_i32 = arith.constant 0 : i32
    %c0_i32_0 = arith.constant 0 : i32
    %c0_i32_1 = arith.constant 0 : i32
    return %c0_i32, %c0_i32_0 : i32, i32
  }
  func.func @transform_5(%arg0: i32) -> (i32, i32) {
    %c0_i32 = arith.constant 0 : i32
    %c0_i32_0 = arith.constant 0 : i32
    return %arg0, %c0_i32 : i32, i32
  }
  func.func @transform_6(%arg0: i32) -> (i32, i32) {
    %c0_i32 = arith.constant 0 : i32
    %c0_i32_0 = arith.constant 0 : i32
    return %arg0, %c0_i32 : i32, i32
  }
}

</mosaic_0001>

<llo_original>
// kernel: _lambda_.7
$region0: #{_lambda_.7}
  #allocation0 [shape = 'u32[]', space=smem, size = 0x4, offset = 0x4, fixed_abs, tag = 'smem constant byte address 0x4 - core index']
  #allocation1 [shape = 'u32[72,128]{1,0:T(1,128)}', space=vmem, size = 0x9000, scoped, tag = 'internal scratch']
  %s0 = inlined_call_operand.hbm [shape: f32[64,32], index: 0, kind: input, shape index: {}]
  %s1 = inlined_call_operand.hbm [shape: f32[32,96], index: 1, kind: input, shape index: {}]
  %s2 = inlined_call_operand.vmem [shape: f32[1,96], index: 2, kind: input, shape index: {}]
  %s3 = inlined_call_operand.vmem [shape: f32[64,96], index: 3, kind: output, shape index: {}]
  %s4 = sld [smem:[#allocation0]]
  $region30: #{_lambda_.7} parent=0
    _
  %s6 = ssub.s32 1, %s4
  %s7 = scalar_select 0, %s6, %s4
  $region1: #{_lambda_.7} parent=0
    #allocation2 [shape = 'u8[32768]{0}', space=vmem, size = 0x8000, scoped, tag = 'input window, operand 0, single buffered']
    #allocation3 [shape = 's32[1]{0}', space=sflag, size = 0x4, scoped, tag = 'scoped memory for _lambda_.7']
    #allocation4 [shape = 'u8[16384]{0}', space=vmem, size = 0x4000, scoped, tag = 'input window, operand 1, single buffered']
    #allocation5 [shape = 's32[1]{0}', space=sflag, size = 0x4, scoped, tag = 'scoped memory for _lambda_.7']
    %8 = vsyncpa [#allocation3], 0
    %9 = vsyncpa [#allocation5], 0
    // Predicated region
    $region2: #{_lambda_.7} parent=1 // pred_check
      _
    $region3: #{_lambda_.7} parent=1 // pred_check_branch
      %11 = sbr.rel (0) target = $region5
    $region4: #{_lambda_.7} parent=1 // pred_region
      %13 = vsyncadd [#allocation3], 0
      %s14 = sshll.u32 %s0, 4
      %s15 = int_to_ptr.hbm [resolvable:$true] %s14
      %s16 = sshll.u32 [#allocation2], 4
      %s17 = int_to_ptr.vmem [resolvable:$true] %s16
      %22 = dma.hbm_to_vmem [thread:$0]  %s15, 1024, %s17, [#allocation3], 128, 128, 8
    $region5: #{_lambda_.7} parent=1 // pred_fallthru
      _
    // Predicated region
    $region6: #{_lambda_.7} parent=1 // pred_check
      _
    $region7: #{_lambda_.7} parent=1 // pred_check_branch
      %24 = sbr.rel (0) target = $region9
    $region8: #{_lambda_.7} parent=1 // pred_region
      %26 = vsyncadd [#allocation5], 0
      %s27 = sshll.u32 %s1, 4
      %s28 = int_to_ptr.hbm [resolvable:$true] %s27
      %s29 = sshll.u32 [#allocation4], 4
      %s30 = int_to_ptr.vmem [resolvable:$true] %s29
      %35 = dma.hbm_to_vmem [thread:$0]  %s28, 512, %s30, [#allocation5], 128, 128, 8
    $region9: #{_lambda_.7} parent=1 // pred_fallthru
      _
    // Predicated region
    $region10: #{_lambda_.7} parent=1 // pred_check
      _
    $region11: #{_lambda_.7} parent=1 // pred_check_branch
      %37 = sbr.rel (0) target = $region13
    $region12: #{_lambda_.7} parent=1 // pred_region
      _
    $region13: #{_lambda_.7} parent=1 // pred_fallthru
      _
    // Predicated region
    $region14: #{_lambda_.7} parent=1 // pred_check
      _
    $region15: #{_lambda_.7} parent=1 // pred_check_branch
      %39 = sbr.rel (0) target = $region17
    $region16: #{_lambda_.7} parent=1 // pred_region
      %41 = dma.done [#allocation3], 1024
    $region17: #{_lambda_.7} parent=1 // pred_fallthru
      _
    // Predicated region
    $region18: #{_lambda_.7} parent=1 // pred_check
      _
    $region19: #{_lambda_.7} parent=1 // pred_check_branch
      %43 = sbr.rel (0) target = $region21
    $region20: #{_lambda_.7} parent=1 // pred_region
      %45 = dma.done [#allocation5], 512
    $region21: #{_lambda_.7} parent=1 // pred_fallthru
      _
    %v46 = vld [vmem:[#allocation2] sm:$0xff]
    %v47 = vld [vmem:[#allocation2 + $0x8] sm:$0xff]
    %v48 = vld [vmem:[#allocation2 + $0x10] sm:$0xff]
    %v49 = vld [vmem:[#allocation2 + $0x18] sm:$0xff]
    %v50 = vld [vmem:[#allocation2 + $0x20] sm:$0xff]
    %v51 = vld [vmem:[#allocation2 + $0x28] sm:$0xff]
    %v52 = vld [vmem:[#allocation2 + $0x30] sm:$0xff]
    %v53 = vld [vmem:[#allocation2 + $0x38] sm:$0xff]
    %v54 = vld [vmem:[#allocation4] sm:$0xff]
    %v55 = vld [vmem:[#allocation4 + $0x8] sm:$0xff]
    %v56 = vld [vmem:[#allocation4 + $0x10] sm:$0xff]
    %v57 = vld [vmem:[#allocation4 + $0x18] sm:$0xff]
    %v58 = vld [vmem:[%s2] sm:$0x1]
    %v60 = vperm.slane %v58, 0
    %vm62 = vcmask 261120
    %v64 = vsel %vm62, %v46, 0
    %v67 = vsel %vm62, %v47, 0
    %v70 = vsel %vm62, %v48, 0
    %v73 = vsel %vm62, %v49, 0
    %v76 = vsel %vm62, %v50, 0
    %v79 = vsel %vm62, %v51, 0
    %v82 = vsel %vm62, %v52, 0
    %v85 = vsel %vm62, %v53, 0
    %87 = vmatpush.msra.mxu0 0.0
    %88 = vmatpush.msra.mxu0 0.0
    %89 = vmatpush.msra.mxu0 0.0
    %90 = vmatpush.msra.mxu0 0.0
    %91 = vmatpush.msra.mxu0 0.0
    %92 = vmatpush.msra.mxu0 0.0
    %93 = vmatpush.msra.mxu0 0.0
    %94 = vmatpush.msra.mxu0 0.0
    %95 = vmatpush.msra.mxu0 0.0
    %96 = vmatpush.msra.mxu0 0.0
    %97 = vmatpush.msra.mxu0 0.0
    %98 = vmatpush.msra.mxu0 0.0
    %99 = vmatpush.msra.mxu0 %v57
    %100 = vmatpush.msra.mxu0 %v56
    %101 = vmatpush.msra.mxu0 %v55
    %102 = vmatpush.msra.mxu0 %v54
    %103 = vmatmul.f32.gmra.mxu0 %v64
    %v104 = vpop.f32.mrf.mxu0
    %v105 = vadd.f32 %v60, %v104
    %106 = vmatmul.f32.gmra.mxu0 %v67
    %v107 = vpop.f32.mrf.mxu0
    %v108 = vadd.f32 %v60, %v107
    %109 = vmatmul.f32.gmra.mxu0 %v70
    %v110 = vpop.f32.mrf.mxu0
    %v111 = vadd.f32 %v60, %v110
    %112 = vmatmul.f32.gmra.mxu0 %v73
    %v113 = vpop.f32.mrf.mxu0
    %v114 = vadd.f32 %v60, %v113
    %115 = vmatmul.f32.gmra.mxu0 %v76
    %v116 = vpop.f32.mrf.mxu0
    %v117 = vadd.f32 %v60, %v116
    %118 = vmatmul.f32.gmra.mxu0 %v79
    %v119 = vpop.f32.mrf.mxu0
    %v120 = vadd.f32 %v60, %v119
    %121 = vmatmul.f32.gmra.mxu0 %v82
    %v122 = vpop.f32.mrf.mxu0
    %v123 = vadd.f32 %v60, %v122
    %124 = vmatmul.f32.gmra.mxu0 %v85
    %v125 = vpop.f32.mrf.mxu0
    %v126 = vadd.f32 %v60, %v125
    %127 = vdwg.mxu0
    %vm128 = vcmask 785408
    %129 = vst.msk [vmem:[%s3] sm:$0xff] %vm128, %v105
    %130 = vst.msk [vmem:[%s3 + $0x8] sm:$0xff] %vm128, %v108
    %131 = vst.msk [vmem:[%s3 + $0x10] sm:$0xff] %vm128, %v111
    %132 = vst.msk [vmem:[%s3 + $0x18] sm:$0xff] %vm128, %v114
    %133 = vst.msk [vmem:[%s3 + $0x20] sm:$0xff] %vm128, %v117
    %134 = vst.msk [vmem:[%s3 + $0x28] sm:$0xff] %vm128, %v120
    %135 = vst.msk [vmem:[%s3 + $0x30] sm:$0xff] %vm128, %v123
    %136 = vst.msk [vmem:[%s3 + $0x38] sm:$0xff] %vm128, %v126
    // Predicated region
    $region22: #{_lambda_.7} parent=1 // pred_check
      _
    $region23: #{_lambda_.7} parent=1 // pred_check_branch
      %138 = sbr.rel (0) target = $region25
    $region24: #{_lambda_.7} parent=1 // pred_region
      _
    $region25: #{_lambda_.7} parent=1 // pred_fallthru
      _
    // Predicated region
    $region26: #{_lambda_.7} parent=1 // pred_check
      _
    $region27: #{_lambda_.7} parent=1 // pred_check_branch
      %140 = sbr.rel (0) target = $region29
    $region28: #{_lambda_.7} parent=1 // pred_region
      _
    $region29: #{_lambda_.7} parent=1 // pred_fallthru
      _
    %141 = vsyncpa [#allocation3], 1
    %142 = vsyncpa [#allocation5], 1

// kernel: _lambda_.9
$region0: #{_lambda_.9}
  #allocation0 [shape = 'u32[]', space=smem, size = 0x4, offset = 0x4, fixed_abs, tag = 'smem constant byte address 0x4 - core index']
  #allocation1 [shape = 'u32[72,128]{1,0:T(1,128)}', space=vmem, size = 0x9000, scoped, tag = 'internal scratch']
  %s0 = inlined_call_operand.vmem [shape: f32[64,32], index: 0, kind: input, shape index: {}]
  %s1 = inlined_call_operand.vmem [shape: f32[32,32], index: 1, kind: input, shape index: {}]
  %s2 = inlined_call_operand.vmem [shape: f32[1,32], index: 2, kind: input, shape index: {}]
  %s3 = inlined_call_operand.vmem [shape: f32[64,32], index: 3, kind: output, shape index: {}]
  %s4 = sld [smem:[#allocation0]]
  $region22: #{_lambda_.9} parent=0
    _
  %s6 = ssub.s32 1, %s4
  %s7 = scalar_select 0, %s6, %s4
  // Predicated region
  $region2: #{_lambda_.9} parent=0 // pred_check
    _
  $region3: #{_lambda_.9} parent=0 // pred_check_branch
    %9 = sbr.rel (0) target = $region5
  $region4: #{_lambda_.9} parent=0 // pred_region
    _
  $region5: #{_lambda_.9} parent=0 // pred_fallthru
    _
  // Predicated region
  $region6: #{_lambda_.9} parent=0 // pred_check
    _
  $region7: #{_lambda_.9} parent=0 // pred_check_branch
    %11 = sbr.rel (0) target = $region9
  $region8: #{_lambda_.9} parent=0 // pred_region
    _
  $region9: #{_lambda_.9} parent=0 // pred_fallthru
    _
  // Predicated region
  $region10: #{_lambda_.9} parent=0 // pred_check
    _
  $region11: #{_lambda_.9} parent=0 // pred_check_branch
    %13 = sbr.rel (0) target = $region13
  $region12: #{_lambda_.9} parent=0 // pred_region
    _
  $region13: #{_lambda_.9} parent=0 // pred_fallthru
    _
  %v14 = vld [vmem:[%s0] sm:$0xff]
  %v15 = vld [vmem:[%s0 + $0x8] sm:$0xff]
  %v16 = vld [vmem:[%s0 + $0x10] sm:$0xff]
  %v17 = vld [vmem:[%s0 + $0x18] sm:$0xff]
  %v18 = vld [vmem:[%s0 + $0x20] sm:$0xff]
  %v19 = vld [vmem:[%s0 + $0x28] sm:$0xff]
  %v20 = vld [vmem:[%s0 + $0x30] sm:$0xff]
  %v21 = vld [vmem:[%s0 + $0x38] sm:$0xff]
  %v22 = vld [vmem:[%s1] sm:$0xff]
  %v23 = vld [vmem:[%s1 + $0x8] sm:$0xff]
  %v24 = vld [vmem:[%s1 + $0x10] sm:$0xff]
  %v25 = vld [vmem:[%s1 + $0x18] sm:$0xff]
  %v26 = vld [vmem:[%s2] sm:$0x1]
  %v28 = vperm.slane %v26, 0
  %vm30 = vcmask 261120
  %v32 = vsel %vm30, %v14, 0
  %v35 = vsel %vm30, %v15, 0
  %v38 = vsel %vm30, %v16, 0
  %v41 = vsel %vm30, %v17, 0
  %v44 = vsel %vm30, %v18, 0
  %v47 = vsel %vm30, %v19, 0
  %v50 = vsel %vm30, %v20, 0
  %v53 = vsel %vm30, %v21, 0
  %55 = vmatpush.msra.mxu0 0.0
  %56 = vmatpush.msra.mxu0 0.0
  %57 = vmatpush.msra.mxu0 0.0
  %58 = vmatpush.msra.mxu0 0.0
  %59 = vmatpush.msra.mxu0 0.0
  %60 = vmatpush.msra.mxu0 0.0
  %61 = vmatpush.msra.mxu0 0.0
  %62 = vmatpush.msra.mxu0 0.0
  %63 = vmatpush.msra.mxu0 0.0
  %64 = vmatpush.msra.mxu0 0.0
  %65 = vmatpush.msra.mxu0 0.0
  %66 = vmatpush.msra.mxu0 0.0
  %67 = vmatpush.msra.mxu0 %v25
  %68 = vmatpush.msra.mxu0 %v24
  %69 = vmatpush.msra.mxu0 %v23
  %70 = vmatpush.msra.mxu0 %v22
  %71 = vmatmul.f32.gmra.mxu0 %v32
  %v72 = vpop.f32.mrf.mxu0
  %v73 = vadd.f32 %v28, %v72
  %74 = vmatmul.f32.gmra.mxu0 %v35
  %v75 = vpop.f32.mrf.mxu0
  %v76 = vadd.f32 %v28, %v75
  %77 = vmatmul.f32.gmra.mxu0 %v38
  %v78 = vpop.f32.mrf.mxu0
  %v79 = vadd.f32 %v28, %v78
  %80 = vmatmul.f32.gmra.mxu0 %v41
  %v81 = vpop.f32.mrf.mxu0
  %v82 = vadd.f32 %v28, %v81
  %83 = vmatmul.f32.gmra.mxu0 %v44
  %v84 = vpop.f32.mrf.mxu0
  %v85 = vadd.f32 %v28, %v84
  %86 = vmatmul.f32.gmra.mxu0 %v47
  %v87 = vpop.f32.mrf.mxu0
  %v88 = vadd.f32 %v28, %v87
  %89 = vmatmul.f32.gmra.mxu0 %v50
  %v90 = vpop.f32.mrf.mxu0
  %v91 = vadd.f32 %v28, %v90
  %92 = vmatmul.f32.gmra.mxu0 %v53
  %v93 = vpop.f32.mrf.mxu0
  %v94 = vadd.f32 %v28, %v93
  %95 = vdwg.mxu0
  %96 = vst.msk [vmem:[%s3] sm:$0xff] %vm30, %v73
  %97 = vst.msk [vmem:[%s3 + $0x8] sm:$0xff] %vm30, %v76
  %98 = vst.msk [vmem:[%s3 + $0x10] sm:$0xff] %vm30, %v79
  %99 = vst.msk [vmem:[%s3 + $0x18] sm:$0xff] %vm30, %v82
  %100 = vst.msk [vmem:[%s3 + $0x20] sm:$0xff] %vm30, %v85
  %101 = vst.msk [vmem:[%s3 + $0x28] sm:$0xff] %vm30, %v88
  %102 = vst.msk [vmem:[%s3 + $0x30] sm:$0xff] %vm30, %v91
  %103 = vst.msk [vmem:[%s3 + $0x38] sm:$0xff] %vm30, %v94
  // Predicated region
  $region14: #{_lambda_.9} parent=0 // pred_check
    _
  $region15: #{_lambda_.9} parent=0 // pred_check_branch
    %105 = sbr.rel (0) target = $region17
  $region16: #{_lambda_.9} parent=0 // pred_region
    _
  $region17: #{_lambda_.9} parent=0 // pred_fallthru
    _
  // Predicated region
  $region18: #{_lambda_.9} parent=0 // pred_check
    _
  $region19: #{_lambda_.9} parent=0 // pred_check_branch
    %107 = sbr.rel (0) target = $region21
  $region20: #{_lambda_.9} parent=0 // pred_region
    _
  $region21: #{_lambda_.9} parent=0 // pred_fallthru
    _

// kernel: _lambda_.10
$region0: #{_lambda_.10}
  #allocation0 [shape = 'u32[]', space=smem, size = 0x4, offset = 0x4, fixed_abs, tag = 'smem constant byte address 0x4 - core index']
  #allocation1 [shape = 'u32[72,128]{1,0:T(1,128)}', space=vmem, size = 0x9000, scoped, tag = 'internal scratch']
  %s0 = inlined_call_operand.vmem [shape: f32[64,32], index: 0, kind: input, shape index: {}]
  %s1 = inlined_call_operand.vmem [shape: f32[32,96], index: 1, kind: input, shape index: {}]
  %s2 = inlined_call_operand.vmem [shape: f32[1,96], index: 2, kind: input, shape index: {}]
  %s3 = inlined_call_operand.vmem [shape: f32[64,96], index: 3, kind: output, shape index: {}]
  %s4 = sld [smem:[#allocation0]]
  $region22: #{_lambda_.10} parent=0
    _
  %s6 = ssub.s32 1, %s4
  %s7 = scalar_select 0, %s6, %s4
  // Predicated region
  $region2: #{_lambda_.10} parent=0 // pred_check
    _
  $region3: #{_lambda_.10} parent=0 // pred_check_branch
    %9 = sbr.rel (0) target = $region5
  $region4: #{_lambda_.10} parent=0 // pred_region
    _
  $region5: #{_lambda_.10} parent=0 // pred_fallthru
    _
  // Predicated region
  $region6: #{_lambda_.10} parent=0 // pred_check
    _
  $region7: #{_lambda_.10} parent=0 // pred_check_branch
    %11 = sbr.rel (0) target = $region9
  $region8: #{_lambda_.10} parent=0 // pred_region
    _
  $region9: #{_lambda_.10} parent=0 // pred_fallthru
    _
  // Predicated region
  $region10: #{_lambda_.10} parent=0 // pred_check
    _
  $region11: #{_lambda_.10} parent=0 // pred_check_branch
    %13 = sbr.rel (0) target = $region13
  $region12: #{_lambda_.10} parent=0 // pred_region
    _
  $region13: #{_lambda_.10} parent=0 // pred_fallthru
    _
  %v14 = vld [vmem:[%s0] sm:$0xff]
  %v15 = vld [vmem:[%s0 + $0x8] sm:$0xff]
  %v16 = vld [vmem:[%s0 + $0x10] sm:$0xff]
  %v17 = vld [vmem:[%s0 + $0x18] sm:$0xff]
  %v18 = vld [vmem:[%s0 + $0x20] sm:$0xff]
  %v19 = vld [vmem:[%s0 + $0x28] sm:$0xff]
  %v20 = vld [vmem:[%s0 + $0x30] sm:$0xff]
  %v21 = vld [vmem:[%s0 + $0x38] sm:$0xff]
  %v22 = vld [vmem:[%s1] sm:$0xff]
  %v23 = vld [vmem:[%s1 + $0x8] sm:$0xff]
  %v24 = vld [vmem:[%s1 + $0x10] sm:$0xff]
  %v25 = vld [vmem:[%s1 + $0x18] sm:$0xff]
  %v26 = vld [vmem:[%s2] sm:$0x1]
  %v28 = vperm.slane %v26, 0
  %vm30 = vcmask 261120
  %v32 = vsel %vm30, %v14, 0
  %v35 = vsel %vm30, %v15, 0
  %v38 = vsel %vm30, %v16, 0
  %v41 = vsel %vm30, %v17, 0
  %v44 = vsel %vm30, %v18, 0
  %v47 = vsel %vm30, %v19, 0
  %v50 = vsel %vm30, %v20, 0
  %v53 = vsel %vm30, %v21, 0
  %55 = vmatpush.msra.mxu0 0.0
  %56 = vmatpush.msra.mxu0 0.0
  %57 = vmatpush.msra.mxu0 0.0
  %58 = vmatpush.msra.mxu0 0.0
  %59 = vmatpush.msra.mxu0 0.0
  %60 = vmatpush.msra.mxu0 0.0
  %61 = vmatpush.msra.mxu0 0.0
  %62 = vmatpush.msra.mxu0 0.0
  %63 = vmatpush.msra.mxu0 0.0
  %64 = vmatpush.msra.mxu0 0.0
  %65 = vmatpush.msra.mxu0 0.0
  %66 = vmatpush.msra.mxu0 0.0
  %67 = vmatpush.msra.mxu0 %v25
  %68 = vmatpush.msra.mxu0 %v24
  %69 = vmatpush.msra.mxu0 %v23
  %70 = vmatpush.msra.mxu0 %v22
  %71 = vmatmul.f32.gmra.mxu0 %v32
  %v72 = vpop.f32.mrf.mxu0
  %v73 = vadd.f32 %v28, %v72
  %74 = vmatmul.f32.gmra.mxu0 %v35
  %v75 = vpop.f32.mrf.mxu0
  %v76 = vadd.f32 %v28, %v75
  %77 = vmatmul.f32.gmra.mxu0 %v38
  %v78 = vpop.f32.mrf.mxu0
  %v79 = vadd.f32 %v28, %v78
  %80 = vmatmul.f32.gmra.mxu0 %v41
  %v81 = vpop.f32.mrf.mxu0
  %v82 = vadd.f32 %v28, %v81
  %83 = vmatmul.f32.gmra.mxu0 %v44
  %v84 = vpop.f32.mrf.mxu0
  %v85 = vadd.f32 %v28, %v84
  %86 = vmatmul.f32.gmra.mxu0 %v47
  %v87 = vpop.f32.mrf.mxu0
  %v88 = vadd.f32 %v28, %v87
  %89 = vmatmul.f32.gmra.mxu0 %v50
  %v90 = vpop.f32.mrf.mxu0
  %v91 = vadd.f32 %v28, %v90
  %92 = vmatmul.f32.gmra.mxu0 %v53
  %v93 = vpop.f32.mrf.mxu0
  %v94 = vadd.f32 %v28, %v93
  %95 = vdwg.mxu0
  %vm96 = vcmask 785408
  %97 = vst.msk [vmem:[%s3] sm:$0xff] %vm96, %v73
  %98 = vst.msk [vmem:[%s3 + $0x8] sm:$0xff] %vm96, %v76
  %99 = vst.msk [vmem:[%s3 + $0x10] sm:$0xff] %vm96, %v79
  %100 = vst.msk [vmem:[%s3 + $0x18] sm:$0xff] %vm96, %v82
  %101 = vst.msk [vmem:[%s3 + $0x20] sm:$0xff] %vm96, %v85
  %102 = vst.msk [vmem:[%s3 + $0x28] sm:$0xff] %vm96, %v88
  %103 = vst.msk [vmem:[%s3 + $0x30] sm:$0xff] %vm96, %v91
  %104 = vst.msk [vmem:[%s3 + $0x38] sm:$0xff] %vm96, %v94
  // Predicated region
  $region14: #{_lambda_.10} parent=0 // pred_check
    _
  $region15: #{_lambda_.10} parent=0 // pred_check_branch
    %106 = sbr.rel (0) target = $region17
  $region16: #{_lambda_.10} parent=0 // pred_region
    _
  $region17: #{_lambda_.10} parent=0 // pred_fallthru
    _
  // Predicated region
  $region18: #{_lambda_.10} parent=0 // pred_check
    _
  $region19: #{_lambda_.10} parent=0 // pred_check_branch
    %108 = sbr.rel (0) target = $region21
  $region20: #{_lambda_.10} parent=0 // pred_region
    _
  $region21: #{_lambda_.10} parent=0 // pred_fallthru
    _

// kernel: _lambda_.8
$region0: #{_lambda_.8}
  #allocation0 [shape = 'u32[]', space=smem, size = 0x4, offset = 0x4, fixed_abs, tag = 'smem constant byte address 0x4 - core index']
  #allocation1 [shape = 'u32[72,128]{1,0:T(1,128)}', space=vmem, size = 0x9000, scoped, tag = 'internal scratch']
  #allocation2 [shape = 'f32[16,1]{1,0:T(8,128)}', space=vmem, size = 0x2000, scoped, tag = 'scratch operand']
  #allocation3 [shape = 'f32[16,1]{1,0:T(8,128)}', space=vmem, size = 0x2000, scoped, tag = 'scratch operand']
  #allocation4 [shape = 'f32[16,8]{1,0:T(8,128)}', space=vmem, size = 0x2000, scoped, tag = 'scratch operand']
  %s0 = inlined_call_operand.vmem [shape: f32[4,4,16,8], index: 0, kind: input, shape index: {}]
  %s1 = inlined_call_operand.vmem [shape: f32[4,4,16,8], index: 1, kind: input, shape index: {}]
  %s2 = inlined_call_operand.vmem [shape: f32[4,4,16,8], index: 2, kind: input, shape index: {}]
  %s3 = inlined_call_operand.vmem [shape: f32[4,4,16,8], index: 3, kind: output, shape index: {}]
  %s4 = sld [smem:[#allocation0]]
  $region53: #{_lambda_.8} parent=0
    _
  %s6 = ssub.s32 1, %s4
  %s7 = scalar_select 0, %s6, %s4
  loop: start=0, step=1, limit=18
  $region2: #{_lambda_.8} parent=0 // loop_pre_header
    _
  $region3: #{_lambda_.8} parent=0 // loop_header
    %s9 = sphi 0, %s13
    %p10 = scmp.ge.s32.totalorder %s9, 18
    %s16 = sphi 0, %s35
    %s17 = sphi 0, %s31
    %s18 = sphi 0, %s27
    %s19 = sphi 0, %s16
    %s20 = sphi 0, %s17
    %s21 = sphi 0, %s18
    %s22 = sphi 0, %s19
    %s23 = sphi 0, %s20
    %s24 = sphi 0, %s21
    %s40 = sphi 0, %s42
    %s43 = sphi 0, %s40
    %s44 = sphi 0, %s43
    %s60 = sphi 0, %s44
    %s70 = sphi 0, %s72
    %s73 = sphi 0, %s70
    %s74 = sphi 0, %s73
    %s90 = sphi 0, %s74
    %s100 = sphi 0, %s102
    %s103 = sphi 0, %s100
    %s104 = sphi 0, %s103
    %s120 = sphi 0, %s104
    %s128 = sphi 0, %s130
    %s131 = sphi 0, %s128
    %s132 = sphi 0, %s131
    %s148 = sphi 0, %s132
  $region4: #{_lambda_.8} parent=0 // loop_header_branch
    %12 = sbr.rel (%p10) target = $region8
  $region5: #{_lambda_.8} parent=0 // loop_body
    %s14 = ssub.s32 %s9, 1
    %s15 = ssub.s32 %s9, 2
    %s25 = sadd.s32 1, %s18
    %p26 = scmp.ge.s32.totalorder %s25, 1
    %s27 = scalar_select %p26, 0, %s25
    %s28 = sadd.s32 1, %s17
    %s29 = scalar_select %p26, %s28, %s17
    %p30 = scmp.ge.s32.totalorder %s29, 4
    %s31 = scalar_select %p30, 0, %s29
    %s32 = sadd.s32 1, %s16
    %s33 = scalar_select %p30, %s32, %s16
    %p34 = scmp.ge.s32.totalorder %s33, 4
    %s35 = scalar_select %p34, 0, %s33
    %s36 = ssub.s32 %s16, %s35
    %s37 = ssub.s32 %s17, %s31
    %s38 = sor.u32 %s36, %s37
    %p39 = scmp.eq.s32.totalorder %s38, 0
    %s41 = sadd.s32 %s40, 1
    %s42 = scalar_select %p39, %s40, %s41
    %p45 = pneg %p39
    %p46 = scmp.eq.s32.totalorder %s9, 15
    %p47 = por %p45, %p46
    %p48 = scmp.ne.s32.totalorder %s40, %s43
    %p49 = scmp.eq.s32.totalorder %s9, 0
    %p50 = por %p48, %p49
    %p51 = scmp.ne.s32.totalorder %s40, %s43
    %p52 = scmp.eq.s32.totalorder %s14, 15
    %p53 = por %p51, %p52
    %p54 = scmp.ne.s32.totalorder %s43, %s44
    %p55 = scmp.eq.s32.totalorder %s14, 0
    %p56 = por %p54, %p55
    %p57 = scmp.ne.s32.totalorder %s43, %s44
    %p58 = scmp.eq.s32.totalorder %s15, 15
    %p59 = por %p57, %p58
    %p61 = scmp.ne.s32.totalorder %s44, %s60
    %p62 = scmp.eq.s32.totalorder %s15, 0
    %p63 = por %p61, %p62
    %s64 = ssub.s32 %s16, %s35
    %s65 = ssub.s32 %s17, %s31
    %s66 = sor.u32 %s64, %s65
    %s67 = ssub.s32 %s18, %s27
    %s68 = sor.u32 %s66, %s67
    %p69 = scmp.eq.s32.totalorder %s68, 0
    %s71 = sadd.s32 %s70, 1
    %s72 = scalar_select %p69, %s70, %s71
    %p75 = pneg %p69
    %p76 = scmp.eq.s32.totalorder %s9, 15
    %p77 = por %p75, %p76
    %p78 = scmp.ne.s32.totalorder %s70, %s73
    %p79 = scmp.eq.s32.totalorder %s9, 0
    %p80 = por %p78, %p79
    %p81 = scmp.ne.s32.totalorder %s70, %s73
    %p82 = scmp.eq.s32.totalorder %s14, 15
    %p83 = por %p81, %p82
    %p84 = scmp.ne.s32.totalorder %s73, %s74
    %p85 = scmp.eq.s32.totalorder %s14, 0
    %p86 = por %p84, %p85
    %p87 = scmp.ne.s32.totalorder %s73, %s74
    %p88 = scmp.eq.s32.totalorder %s15, 15
    %p89 = por %p87, %p88
    %p91 = scmp.ne.s32.totalorder %s74, %s90
    %p92 = scmp.eq.s32.totalorder %s15, 0
    %p93 = por %p91, %p92
    %s94 = ssub.s32 %s16, %s35
    %s95 = ssub.s32 %s17, %s31
    %s96 = sor.u32 %s94, %s95
    %s97 = ssub.s32 %s18, %s27
    %s98 = sor.u32 %s96, %s97
    %p99 = scmp.eq.s32.totalorder %s98, 0
    %s101 = sadd.s32 %s100, 1
    %s102 = scalar_select %p99, %s100, %s101
    %p105 = pneg %p99
    %p106 = scmp.eq.s32.totalorder %s9, 15
    %p107 = por %p105, %p106
    %p108 = scmp.ne.s32.totalorder %s100, %s103
    %p109 = scmp.eq.s32.totalorder %s9, 0
    %p110 = por %p108, %p109
    %p111 = scmp.ne.s32.totalorder %s100, %s103
    %p112 = scmp.eq.s32.totalorder %s14, 15
    %p113 = por %p111, %p112
    %p114 = scmp.ne.s32.totalorder %s103, %s104
    %p115 = scmp.eq.s32.totalorder %s14, 0
    %p116 = por %p114, %p115
    %p117 = scmp.ne.s32.totalorder %s103, %s104
    %p118 = scmp.eq.s32.totalorder %s15, 15
    %p119 = por %p117, %p118
    %p121 = scmp.ne.s32.totalorder %s104, %s120
    %p122 = scmp.eq.s32.totalorder %s15, 0
    %p123 = por %p121, %p122
    %s124 = ssub.s32 %s16, %s35
    %s125 = ssub.s32 %s17, %s31
    %s126 = sor.u32 %s124, %s125
    %p127 = scmp.eq.s32.totalorder %s126, 0
    %s129 = sadd.s32 %s128, 1
    %s130 = scalar_select %p127, %s128, %s129
    %p133 = pneg %p127
    %p134 = scmp.eq.s32.totalorder %s9, 15
    %p135 = por %p133, %p134
    %p136 = scmp.ne.s32.totalorder %s128, %s131
    %p137 = scmp.eq.s32.totalorder %s9, 0
    %p138 = por %p136, %p137
    %p139 = scmp.ne.s32.totalorder %s128, %s131
    %p140 = scmp.eq.s32.totalorder %s14, 15
    %p141 = por %p139, %p140
    %p142 = scmp.ne.s32.totalorder %s131, %s132
    %p143 = scmp.eq.s32.totalorder %s14, 0
    %p144 = por %p142, %p143
    %p145 = scmp.ne.s32.totalorder %s131, %s132
    %p146 = scmp.eq.s32.totalorder %s15, 15
    %p147 = por %p145, %p146
    %p149 = scmp.ne.s32.totalorder %s132, %s148
    %p150 = scmp.eq.s32.totalorder %s15, 0
    %p151 = por %p149, %p150
    %p152 = scmp.le.s32.totalorder 1, %s9
    %p153 = scmp.lt.s32.totalorder %s9, 17
    %p154 = pnand %p152, %p153
    %p155 = pneg %p154
    // Predicated region
    $region9: #{_lambda_.8} parent=5 // pred_check
      _
    $region10: #{_lambda_.8} parent=5 // pred_check_branch
      %157 = sbr.rel (%p154) target = $region12
    $region11: #{_lambda_.8} parent=5 // pred_region
      %s158 = ssub.s32 %s9, 1
    $region12: #{_lambda_.8} parent=5 // pred_fallthru
      _
    %p159 = scmp.lt.s32.totalorder %s9, 16
    // Predicated region
    $region13: #{_lambda_.8} parent=5 // pred_check
      %p160 = pneg %p159
    $region14: #{_lambda_.8} parent=5 // pred_check_branch
      %162 = sbr.rel (%p160) target = $region16
    $region15: #{_lambda_.8} parent=5 // pred_region
      // Predicated region
      $region17: #{_lambda_.8} parent=15 // pred_check
        %p163 = pneg %p50
      $region18: #{_lambda_.8} parent=15 // pred_check_branch
        %165 = sbr.rel (%p163) target = $region20
      $region19: #{_lambda_.8} parent=15 // pred_region
        %p166 = scmp.lt.s32.totalorder %s16, 3
        %s167 = scalar_select %p166, %s16, 3
        %p168 = scmp.lt.s32.totalorder %s17, 3
        %s169 = scalar_select %p168, %s17, 3
        %s170 = smul.addr %s169, 2
        %s171 = smul.addr %s167, 8
        %s172 = sadd.s32 %s170, %s171
        %s173 = smul.addr %s172, 8
        %s174 = scalar_lea.vmem %s0, %s173
      $region20: #{_lambda_.8} parent=15 // pred_fallthru
        _
      // Predicated region
      $region21: #{_lambda_.8} parent=15 // pred_check
        %p175 = pneg %p80
      $region22: #{_lambda_.8} parent=15 // pred_check_branch
        %177 = sbr.rel (%p175) target = $region24
      $region23: #{_lambda_.8} parent=15 // pred_region
        %s178 = smul.u32 2, %s18
        %p179 = scmp.lt.s32.totalorder %s16, 3
        %s180 = scalar_select %p179, %s16, 3
        %p181 = scmp.lt.s32.totalorder %s17, 3
        %s182 = scalar_select %p181, %s17, 3
        %p183 = scmp.lt.s32.totalorder %s178, 1
        %s184 = scalar_select %p183, %s178, 1
        %s185 = smul.addr %s182, 2
        %s186 = sadd.s32 %s184, %s185
        %s187 = smul.addr %s180, 8
        %s188 = sadd.s32 %s186, %s187
        %s189 = smul.addr %s188, 8
        %s190 = scalar_lea.vmem %s1, %s189
        %s191 = smul.u32 2, %s18
      $region24: #{_lambda_.8} parent=15 // pred_fallthru
        _
      // Predicated region
      $region25: #{_lambda_.8} parent=15 // pred_check
        %p192 = pneg %p110
      $region26: #{_lambda_.8} parent=15 // pred_check_branch
        %194 = sbr.rel (%p192) target = $region28
      $region27: #{_lambda_.8} parent=15 // pred_region
        %s195 = smul.u32 2, %s18
        %p196 = scmp.lt.s32.totalorder %s16, 3
        %s197 = scalar_select %p196, %s16, 3
        %p198 = scmp.lt.s32.totalorder %s17, 3
        %s199 = scalar_select %p198, %s17, 3
        %p200 = scmp.lt.s32.totalorder %s195, 1
        %s201 = scalar_select %p200, %s195, 1
        %s202 = smul.addr %s199, 2
        %s203 = sadd.s32 %s201, %s202
        %s204 = smul.addr %s197, 8
        %s205 = sadd.s32 %s203, %s204
        %s206 = smul.addr %s205, 8
        %s207 = scalar_lea.vmem %s2, %s206
        %s208 = smul.u32 2, %s18
      $region28: #{_lambda_.8} parent=15 // pred_fallthru
        _
    $region16: #{_lambda_.8} parent=5 // pred_fallthru
      _
    %p209 = scmp.le.s32.totalorder 1, %s9
    %p210 = scmp.lt.s32.totalorder %s9, 17
    %p211 = pnand %p209, %p210
    %p212 = pneg %p211
    // Predicated region
    $region29: #{_lambda_.8} parent=5 // pred_check
      _
    $region30: #{_lambda_.8} parent=5 // pred_check_branch
      %214 = sbr.rel (%p211) target = $region32
    $region31: #{_lambda_.8} parent=5 // pred_region
      %s215 = ssub.s32 %s9, 1
      %p216 = scmp.lt.s32.totalorder %s19, 3
      %s217 = scalar_select %p216, %s19, 3
      %p218 = scmp.lt.s32.totalorder %s20, 3
      %s219 = scalar_select %p218, %s20, 3
      %s220 = smul.addr %s219, 2
      %s221 = smul.addr %s217, 8
      %s222 = sadd.s32 %s220, %s221
      %s223 = smul.addr %s222, 8
      %s224 = scalar_lea.vmem %s0, %s223
      %p225 = pneg %p56
      %p226 = pneg %p53
      %s227 = smul.u32 2, %s21
      %p228 = scmp.lt.s32.totalorder %s19, 3
      %s229 = scalar_select %p228, %s19, 3
      %p230 = scmp.lt.s32.totalorder %s20, 3
      %s231 = scalar_select %p230, %s20, 3
      %p232 = scmp.lt.s32.totalorder %s227, 1
      %s233 = scalar_select %p232, %s227, 1
      %s234 = smul.addr %s231, 2
      %s235 = sadd.s32 %s233, %s234
      %s236 = smul.addr %s229, 8
      %s237 = sadd.s32 %s235, %s236
      %s238 = smul.addr %s237, 8
      %s239 = scalar_lea.vmem %s1, %s238
      %p240 = pneg %p86
      %p241 = pneg %p83
      %s242 = smul.u32 2, %s21
      %p243 = scmp.lt.s32.totalorder %s19, 3
      %s244 = scalar_select %p243, %s19, 3
      %p245 = scmp.lt.s32.totalorder %s20, 3
      %s246 = scalar_select %p245, %s20, 3
      %p247 = scmp.lt.s32.totalorder %s242, 1
      %s248 = scalar_select %p247, %s242, 1
      %s249 = smul.addr %s246, 2
      %s250 = sadd.s32 %s248, %s249
      %s251 = smul.addr %s244, 8
      %s252 = sadd.s32 %s250, %s251
      %s253 = smul.addr %s252, 8
      %s254 = scalar_lea.vmem %s2, %s253
      %p255 = pneg %p116
      %p256 = pneg %p113
      %p257 = pneg %p144
      %p258 = pneg %p141
      %p259 = scmp.lt.s32.totalorder %s19, 3
      %s260 = scalar_select %p259, %s19, 3
      %p261 = scmp.lt.s32.totalorder %s20, 3
      %s262 = scalar_select %p261, %s20, 3
      %s263 = smul.addr %s262, 2
      %s264 = smul.addr %s260, 8
      %s265 = sadd.s32 %s263, %s264
      %s266 = smul.addr %s265, 8
      %s267 = scalar_lea.vmem %s3, %s266
      %p268 = scmp.lt.s32.totalorder %s19, 3
      %s269 = scalar_select %p268, %s19, 3
      %p270 = scmp.lt.s32.totalorder %s20, 3
      %s271 = scalar_select %p270, %s20, 3
      %s272 = smul.addr %s271, 2
      %s273 = smul.addr %s269, 8
      %s274 = sadd.s32 %s272, %s273
      %s275 = smul.addr %s274, 8
      %s276 = scalar_lea.vmem %s0, %s275
      %s277 = smul.u32 2, %s21
      %p278 = scmp.lt.s32.totalorder %s19, 3
      %s279 = scalar_select %p278, %s19, 3
      %p280 = scmp.lt.s32.totalorder %s20, 3
      %s281 = scalar_select %p280, %s20, 3
      %p282 = scmp.lt.s32.totalorder %s277, 1
      %s283 = scalar_select %p282, %s277, 1
      %s284 = smul.addr %s281, 2
      %s285 = sadd.s32 %s283, %s284
      %s286 = smul.addr %s279, 8
      %s287 = sadd.s32 %s285, %s286
      %s288 = smul.addr %s287, 8
      %s289 = scalar_lea.vmem %s1, %s288
      %s290 = smul.u32 2, %s21
      %s291 = smul.u32 2, %s21
      %p292 = scmp.lt.s32.totalorder %s19, 3
      %s293 = scalar_select %p292, %s19, 3
      %p294 = scmp.lt.s32.totalorder %s20, 3
      %s295 = scalar_select %p294, %s20, 3
      %p296 = scmp.lt.s32.totalorder %s291, 1
      %s297 = scalar_select %p296, %s291, 1
      %s298 = smul.addr %s295, 2
      %s299 = sadd.s32 %s297, %s298
      %s300 = smul.addr %s293, 8
      %s301 = sadd.s32 %s299, %s300
      %s302 = smul.addr %s301, 8
      %s303 = scalar_lea.vmem %s2, %s302
      %s304 = smul.u32 2, %s21
      %p305 = scmp.lt.s32.totalorder %s19, 3
      %s306 = scalar_select %p305, %s19, 3
      %p307 = scmp.lt.s32.totalorder %s20, 3
      %s308 = scalar_select %p307, %s20, 3
      %s309 = smul.addr %s308, 2
      %s310 = smul.addr %s306, 8
      %s311 = sadd.s32 %s309, %s310
      %s312 = smul.addr %s311, 8
      %s313 = scalar_lea.vmem %s3, %s312
      %p314 = scmp.eq.s32.totalorder %s21, 0
      // Predicated region
      $region33: #{_lambda_.8} parent=31 // pred_check
        %p315 = pneg %p314
      $region34: #{_lambda_.8} parent=31 // pred_check_branch
        %317 = sbr.rel (%p315) target = $region36
      $region35: #{_lambda_.8} parent=31 // pred_region
        %vm318 = vcmask 7168
        %319 = vst.msk [vmem:[#allocation2] sm:$0xff] %vm318, -inf
        %320 = vst.msk [vmem:[#allocation2 + $0x8] sm:$0xff] %vm318, -inf
        %321 = vst.msk [vmem:[#allocation3] sm:$0xff] %vm318, 0.0
        %322 = vst.msk [vmem:[#allocation3 + $0x8] sm:$0xff] %vm318, 0.0
        %vm323 = vcmask 64512
        %324 = vst.msk [vmem:[#allocation4] sm:$0xff] %vm323, 0.0
        %325 = vst.msk [vmem:[#allocation4 + $0x8] sm:$0xff] %vm323, 0.0
      $region36: #{_lambda_.8} parent=31 // pred_fallthru
        _
      %v326 = vld [vmem:[%s276] sm:$0xff]
      %v327 = vld [vmem:[%s276 + $0x8] sm:$0xff]
      %v328 = vmul.f32 %v326, 0.35355338
      %v329 = vmul.f32 %v327, 0.35355338
      %v330 = vld [vmem:[%s289] sm:$0xff]
      %v331 = vld [vmem:[%s289 + $0x8] sm:$0xff]
      %v332 = vld [vmem:[%s303] sm:$0xff]
      %v333 = vld [vmem:[%s303 + $0x8] sm:$0xff]
      %vm334 = vcmask 64512
      %v336 = vsel %vm334, %v328, 0
      %v339 = vsel %vm334, %v329, 0
      %v342 = vsel %vm334, %v330, 0
      %v345 = vsel %vm334, %v331, 0
      %347 = vmatpush.xpose.msra.mxu0 0.0
      %348 = vmatpush.xpose.msra.mxu0 0.0
      %349 = vmatpush.xpose.msra.mxu0 0.0
      %350 = vmatpush.xpose.msra.mxu0 0.0
      %351 = vmatpush.xpose.msra.mxu0 0.0
      %352 = vmatpush.xpose.msra.mxu0 0.0
      %353 = vmatpush.xpose.msra.mxu0 0.0
      %354 = vmatpush.xpose.msra.mxu0 0.0
      %355 = vmatpush.xpose.msra.mxu0 0.0
      %356 = vmatpush.xpose.msra.mxu0 0.0
      %357 = vmatpush.xpose.msra.mxu0 0.0
      %358 = vmatpush.xpose.msra.mxu0 0.0
      %359 = vmatpush.xpose.msra.mxu0 0.0
      %360 = vmatpush.xpose.msra.mxu0 0.0
      %361 = vmatpush.xpose.msra.mxu0 %v345
      %362 = vmatpush.xpose.msra.mxu0 %v342
      %363 = vmatmul.f32.gmra.mxu0 %v336
      %v364 = vpop.f32.mrf.mxu0
      %v365 = vadd.f32 0.0, %v364
      %366 = vmatmul.f32.gmra.mxu0 %v339
      %v367 = vpop.f32.mrf.mxu0
      %v368 = vadd.f32 0.0, %v367
      %369 = vdwg.mxu0
      %v370 = vld [vmem:[#allocation2] sm:$0xff]
      %v371 = vld [vmem:[#allocation2 + $0x8] sm:$0xff]
      %vm372 = vcmask 130048
      %v373 = vsel %vm372, %v365, -inf
      %374 = vmax.xlane.f32.xlu0 %v373
      %v375 = vpop.xlane.xlu0 %374
      %v376 = vsel %vm372, %v368, -inf
      %377 = vmax.xlane.f32.xlu0 %v376
      %v378 = vpop.xlane.xlu0 %377
      %v379 = vmax.f32 %v370, %v375
      %v380 = vmax.f32 %v371, %v378
      %v381 = vsub.f32 %v370, %v379
      %v382 = vsub.f32 %v371, %v380
      %v383 = vmul.f32 %v381, 1.442695
      %v384 = vpow.pop %v383
      %v385 = vmul.f32 %v382, 1.442695
      %v386 = vpow.pop %v385
      %388 = vset.pattern.permute.xlu0 0
      %389 = vperm.xlu0 %388, %v379
      %v390 = vpop.permute.xlu0 %389
      %393 = vset.pattern.permute.xlu0 0
      %394 = vperm.xlu0 %393, %v380
      %v395 = vpop.permute.xlu0 %394
      %v397 = vsub.f32 %v365, %v390
      %v398 = vsub.f32 %v368, %v395
      %v399 = vmul.f32 %v397, 1.442695
      %v400 = vpow.pop %v399
      %v401 = vmul.f32 %v398, 1.442695
      %v402 = vpow.pop %v401
      %v403 = vld [vmem:[#allocation3] sm:$0xff]
      %v404 = vld [vmem:[#allocation3 + $0x8] sm:$0xff]
      %v405 = vmul.f32 %v384, %v403
      %v406 = vmul.f32 %v386, %v404
      %v407 = vsel %vm372, %v400, 0.0
      %408 = vadd.xlane.f32.xlu0 %v407
      %v409 = vpop.xlane.xlu0 %408
      %v410 = vsel %vm372, %v402, 0.0
      %411 = vadd.xlane.f32.xlu0 %v410
      %v412 = vpop.xlane.xlu0 %411
      %v413 = vadd.f32 %v405, %v409
      %v414 = vadd.f32 %v406, %v412
      %vm415 = vcmask 7168
      %416 = vst.msk [vmem:[#allocation3] sm:$0xff] %vm415, %v413
      %417 = vst.msk [vmem:[#allocation3 + $0x8] sm:$0xff] %vm415, %v414
      %v418 = vld [vmem:[#allocation4] sm:$0xff]
      %v419 = vld [vmem:[#allocation4 + $0x8] sm:$0xff]
      %421 = vset.pattern.permute.xlu0 0
      %422 = vperm.xlu0 %421, %v384
      %v423 = vpop.permute.xlu0 %422
      %426 = vset.pattern.permute.xlu0 0
      %427 = vperm.xlu0 %426, %v386
      %v428 = vpop.permute.xlu0 %427
      %v430 = vmul.f32 %v423, %v418
      %v431 = vmul.f32 %v428, %v419
      %v433 = vsel %vm372, %v400, 0
      %v436 = vsel %vm372, %v402, 0
      %438 = vmatpush.msra.mxu0 0.0
      %439 = vmatpush.msra.mxu0 0.0
      %440 = vmatpush.msra.mxu0 0.0
      %441 = vmatpush.msra.mxu0 0.0
      %442 = vmatpush.msra.mxu0 0.0
      %443 = vmatpush.msra.mxu0 0.0
      %444 = vmatpush.msra.mxu0 0.0
      %445 = vmatpush.msra.mxu0 0.0
      %446 = vmatpush.msra.mxu0 0.0
      %447 = vmatpush.msra.mxu0 0.0
      %448 = vmatpush.msra.mxu0 0.0
      %449 = vmatpush.msra.mxu0 0.0
      %450 = vmatpush.msra.mxu0 0.0
      %451 = vmatpush.msra.mxu0 0.0
      %452 = vmatpush.msra.mxu0 %v333
      %453 = vmatpush.msra.mxu0 %v332
      %454 = vmatmul.f32.gmra.mxu0 %v433
      %v455 = vpop.f32.mrf.mxu0
      %v456 = vadd.f32 0.0, %v455
      %457 = vmatmul.f32.gmra.mxu0 %v436
      %v458 = vpop.f32.mrf.mxu0
      %v459 = vadd.f32 0.0, %v458
      %460 = vdwg.mxu0
      %v461 = vadd.f32 %v430, %v456
      %v462 = vadd.f32 %v431, %v459
      %463 = vst.msk [vmem:[#allocation4] sm:$0xff] %vm334, %v461
      %464 = vst.msk [vmem:[#allocation4 + $0x8] sm:$0xff] %vm334, %v462
      %465 = vst.msk [vmem:[#allocation2] sm:$0xff] %vm415, %v379
      %466 = vst.msk [vmem:[#allocation2 + $0x8] sm:$0xff] %vm415, %v380
      // Predicated region
      $region37: #{_lambda_.8} parent=31 // pred_check
        %p467 = pneg %p314
      $region38: #{_lambda_.8} parent=31 // pred_check_branch
        %469 = sbr.rel (%p467) target = $region40
      $region39: #{_lambda_.8} parent=31 // pred_region
        %v470 = vld [vmem:[#allocation3] sm:$0xff]
        %v471 = vld [vmem:[#allocation3 + $0x8] sm:$0xff]
        %v472 = vrcp.pop %v470
        %v473 = vmul.f32 %v470, %v472
        %v474 = vsub.f32 1.0, %v473
        %v475 = vmul.f32 %v472, %v474
        %v476 = vadd.f32 %v472, %v475
        %vm477 = vweird.f32 %v470
        %vm478 = vweird.f32 %v472
        %vm479 = vmor %vm477, %vm478
        %v480 = vsel %vm479, %v472, %v476
        %v481 = vand.u32 2147483647, %v470
        %vm482 = vcmp.eq.f32.partialorder %v481, 8.507059e+37
        %v483 = vand.u32 %v470, 2147483648
        %v484 = vor.u32 1.1754944e-38, %v483
        %v485 = vsel %vm482, %v484, %v480
        %v486 = vrcp.pop %v471
        %v487 = vmul.f32 %v471, %v486
        %v488 = vsub.f32 1.0, %v487
        %v489 = vmul.f32 %v486, %v488
        %v490 = vadd.f32 %v486, %v489
        %vm491 = vweird.f32 %v471
        %vm492 = vweird.f32 %v486
        %vm493 = vmor %vm491, %vm492
        %v494 = vsel %vm493, %v486, %v490
        %v495 = vand.u32 2147483647, %v471
        %vm496 = vcmp.eq.f32.partialorder %v495, 8.507059e+37
        %v497 = vand.u32 %v471, 2147483648
        %v498 = vor.u32 1.1754944e-38, %v497
        %v499 = vsel %vm496, %v498, %v494
        %v500 = vld [vmem:[#allocation4] sm:$0xff]
        %v501 = vld [vmem:[#allocation4 + $0x8] sm:$0xff]
        %503 = vset.pattern.permute.xlu0 0
        %504 = vperm.xlu0 %503, %v485
        %v505 = vpop.permute.xlu0 %504
        %508 = vset.pattern.permute.xlu0 0
        %509 = vperm.xlu0 %508, %v499
        %v510 = vpop.permute.xlu0 %509
        %v512 = vmul.f32 %v500, %v505
        %v513 = vmul.f32 %v501, %v510
        %514 = vst.msk [vmem:[%s313] sm:$0xff] %vm334, %v512
        %515 = vst.msk [vmem:[%s313 + $0x8] sm:$0xff] %vm334, %v513
      $region40: #{_lambda_.8} parent=31 // pred_fallthru
        _
      %p516 = scmp.lt.s32.totalorder %s19, 3
      %s517 = scalar_select %p516, %s19, 3
      %p518 = scmp.lt.s32.totalorder %s20, 3
      %s519 = scalar_select %p518, %s20, 3
      %s520 = smul.addr %s519, 2
      %s521 = smul.addr %s517, 8
      %s522 = sadd.s32 %s520, %s521
      %s523 = smul.addr %s522, 8
      %s524 = scalar_lea.vmem %s3, %s523
      // Predicated region
      $region41: #{_lambda_.8} parent=31 // pred_check
        %p525 = pneg %p141
      $region42: #{_lambda_.8} parent=31 // pred_check_branch
        %527 = sbr.rel (%p525) target = $region44
      $region43: #{_lambda_.8} parent=31 // pred_region
        _
      $region44: #{_lambda_.8} parent=31 // pred_fallthru
        _
    $region32: #{_lambda_.8} parent=5 // pred_fallthru
      _
    %p528 = scmp.le.s32.totalorder 2, %s9
    // Predicated region
    $region45: #{_lambda_.8} parent=5 // pred_check
      %p529 = pneg %p528
    $region46: #{_lambda_.8} parent=5 // pred_check_branch
      %531 = sbr.rel (%p529) target = $region48
    $region47: #{_lambda_.8} parent=5 // pred_region
      %s532 = ssub.s32 %s9, 2
      // Predicated region
      $region49: #{_lambda_.8} parent=47 // pred_check
        %p533 = pneg %p147
      $region50: #{_lambda_.8} parent=47 // pred_check_branch
        %535 = sbr.rel (%p533) target = $region52
      $region51: #{_lambda_.8} parent=47 // pred_region
        %p536 = scmp.lt.s32.totalorder %s22, 3
        %s537 = scalar_select %p536, %s22, 3
        %p538 = scmp.lt.s32.totalorder %s23, 3
        %s539 = scalar_select %p538, %s23, 3
        %s540 = smul.addr %s539, 2
        %s541 = smul.addr %s537, 8
        %s542 = sadd.s32 %s540, %s541
        %s543 = smul.addr %s542, 8
        %s544 = scalar_lea.vmem %s3, %s543
      $region52: #{_lambda_.8} parent=47 // pred_fallthru
        _
    $region48: #{_lambda_.8} parent=5 // pred_fallthru
      _
  $region6: #{_lambda_.8} parent=0 // loop_footer
    %s13 = sadd.s32 1, %s9
  $region7: #{_lambda_.8} parent=0 // loop_footer_branch
    %8 = sbr.rel target = $region3
  $region8: #{_lambda_.8} parent=0 // loop_exit
    _

// kernel: _lambda_.11
$region0: #{_lambda_.11}
  #allocation0 [shape = 'u32[]', space=smem, size = 0x4, offset = 0x4, fixed_abs, tag = 'smem constant byte address 0x4 - core index']
  #allocation1 [shape = 'u32[72,128]{1,0:T(1,128)}', space=vmem, size = 0x9000, scoped, tag = 'internal scratch']
  #allocation2 [shape = 'f32[8,1]{1,0:T(8,128)}', space=vmem, size = 0x1000, scoped, tag = 'scratch operand']
  #allocation3 [shape = 'f32[8,1]{1,0:T(8,128)}', space=vmem, size = 0x1000, scoped, tag = 'scratch operand']
  #allocation4 [shape = 'f32[8,8]{1,0:T(8,128)}', space=vmem, size = 0x1000, scoped, tag = 'scratch operand']
  %s0 = inlined_call_operand.vmem [shape: f32[8,4,8,8], index: 0, kind: input, shape index: {}]
  %s1 = inlined_call_operand.vmem [shape: f32[8,4,8,8], index: 1, kind: input, shape index: {}]
  %s2 = inlined_call_operand.vmem [shape: f32[8,4,8,8], index: 2, kind: input, shape index: {}]
  %s3 = inlined_call_operand.vmem [shape: f32[8,4,8,8], index: 3, kind: output, shape index: {}]
  %s4 = sld [smem:[#allocation0]]
  $region53: #{_lambda_.11} parent=0
    _
  %s6 = ssub.s32 1, %s4
  %s7 = scalar_select 0, %s6, %s4
  loop: start=0, step=1, limit=34
  $region2: #{_lambda_.11} parent=0 // loop_pre_header
    _
  $region3: #{_lambda_.11} parent=0 // loop_header
    %s9 = sphi 0, %s13
    %p10 = scmp.ge.s32.totalorder %s9, 34
    %s16 = sphi 0, %s35
    %s17 = sphi 0, %s31
    %s18 = sphi 0, %s27
    %s19 = sphi 0, %s16
    %s20 = sphi 0, %s17
    %s21 = sphi 0, %s18
    %s22 = sphi 0, %s19
    %s23 = sphi 0, %s20
    %s24 = sphi 0, %s21
    %s40 = sphi 0, %s42
    %s43 = sphi 0, %s40
    %s44 = sphi 0, %s43
    %s60 = sphi 0, %s44
    %s70 = sphi 0, %s72
    %s73 = sphi 0, %s70
    %s74 = sphi 0, %s73
    %s90 = sphi 0, %s74
    %s100 = sphi 0, %s102
    %s103 = sphi 0, %s100
    %s104 = sphi 0, %s103
    %s120 = sphi 0, %s104
    %s128 = sphi 0, %s130
    %s131 = sphi 0, %s128
    %s132 = sphi 0, %s131
    %s148 = sphi 0, %s132
  $region4: #{_lambda_.11} parent=0 // loop_header_branch
    %12 = sbr.rel (%p10) target = $region8
  $region5: #{_lambda_.11} parent=0 // loop_body
    %s14 = ssub.s32 %s9, 1
    %s15 = ssub.s32 %s9, 2
    %s25 = sadd.s32 1, %s18
    %p26 = scmp.ge.s32.totalorder %s25, 1
    %s27 = scalar_select %p26, 0, %s25
    %s28 = sadd.s32 1, %s17
    %s29 = scalar_select %p26, %s28, %s17
    %p30 = scmp.ge.s32.totalorder %s29, 4
    %s31 = scalar_select %p30, 0, %s29
    %s32 = sadd.s32 1, %s16
    %s33 = scalar_select %p30, %s32, %s16
    %p34 = scmp.ge.s32.totalorder %s33, 8
    %s35 = scalar_select %p34, 0, %s33
    %s36 = ssub.s32 %s16, %s35
    %s37 = ssub.s32 %s17, %s31
    %s38 = sor.u32 %s36, %s37
    %p39 = scmp.eq.s32.totalorder %s38, 0
    %s41 = sadd.s32 %s40, 1
    %s42 = scalar_select %p39, %s40, %s41
    %p45 = pneg %p39
    %p46 = scmp.eq.s32.totalorder %s9, 31
    %p47 = por %p45, %p46
    %p48 = scmp.ne.s32.totalorder %s40, %s43
    %p49 = scmp.eq.s32.totalorder %s9, 0
    %p50 = por %p48, %p49
    %p51 = scmp.ne.s32.totalorder %s40, %s43
    %p52 = scmp.eq.s32.totalorder %s14, 31
    %p53 = por %p51, %p52
    %p54 = scmp.ne.s32.totalorder %s43, %s44
    %p55 = scmp.eq.s32.totalorder %s14, 0
    %p56 = por %p54, %p55
    %p57 = scmp.ne.s32.totalorder %s43, %s44
    %p58 = scmp.eq.s32.totalorder %s15, 31
    %p59 = por %p57, %p58
    %p61 = scmp.ne.s32.totalorder %s44, %s60
    %p62 = scmp.eq.s32.totalorder %s15, 0
    %p63 = por %p61, %p62
    %s64 = ssub.s32 %s16, %s35
    %s65 = ssub.s32 %s17, %s31
    %s66 = sor.u32 %s64, %s65
    %s67 = ssub.s32 %s18, %s27
    %s68 = sor.u32 %s66, %s67
    %p69 = scmp.eq.s32.totalorder %s68, 0
    %s71 = sadd.s32 %s70, 1
    %s72 = scalar_select %p69, %s70, %s71
    %p75 = pneg %p69
    %p76 = scmp.eq.s32.totalorder %s9, 31
    %p77 = por %p75, %p76
    %p78 = scmp.ne.s32.totalorder %s70, %s73
    %p79 = scmp.eq.s32.totalorder %s9, 0
    %p80 = por %p78, %p79
    %p81 = scmp.ne.s32.totalorder %s70, %s73
    %p82 = scmp.eq.s32.totalorder %s14, 31
    %p83 = por %p81, %p82
    %p84 = scmp.ne.s32.totalorder %s73, %s74
    %p85 = scmp.eq.s32.totalorder %s14, 0
    %p86 = por %p84, %p85
    %p87 = scmp.ne.s32.totalorder %s73, %s74
    %p88 = scmp.eq.s32.totalorder %s15, 31
    %p89 = por %p87, %p88
    %p91 = scmp.ne.s32.totalorder %s74, %s90
    %p92 = scmp.eq.s32.totalorder %s15, 0
    %p93 = por %p91, %p92
    %s94 = ssub.s32 %s16, %s35
    %s95 = ssub.s32 %s17, %s31
    %s96 = sor.u32 %s94, %s95
    %s97 = ssub.s32 %s18, %s27
    %s98 = sor.u32 %s96, %s97
    %p99 = scmp.eq.s32.totalorder %s98, 0
    %s101 = sadd.s32 %s100, 1
    %s102 = scalar_select %p99, %s100, %s101
    %p105 = pneg %p99
    %p106 = scmp.eq.s32.totalorder %s9, 31
    %p107 = por %p105, %p106
    %p108 = scmp.ne.s32.totalorder %s100, %s103
    %p109 = scmp.eq.s32.totalorder %s9, 0
    %p110 = por %p108, %p109
    %p111 = scmp.ne.s32.totalorder %s100, %s103
    %p112 = scmp.eq.s32.totalorder %s14, 31
    %p113 = por %p111, %p112
    %p114 = scmp.ne.s32.totalorder %s103, %s104
    %p115 = scmp.eq.s32.totalorder %s14, 0
    %p116 = por %p114, %p115
    %p117 = scmp.ne.s32.totalorder %s103, %s104
    %p118 = scmp.eq.s32.totalorder %s15, 31
    %p119 = por %p117, %p118
    %p121 = scmp.ne.s32.totalorder %s104, %s120
    %p122 = scmp.eq.s32.totalorder %s15, 0
    %p123 = por %p121, %p122
    %s124 = ssub.s32 %s16, %s35
    %s125 = ssub.s32 %s17, %s31
    %s126 = sor.u32 %s124, %s125
    %p127 = scmp.eq.s32.totalorder %s126, 0
    %s129 = sadd.s32 %s128, 1
    %s130 = scalar_select %p127, %s128, %s129
    %p133 = pneg %p127
    %p134 = scmp.eq.s32.totalorder %s9, 31
    %p135 = por %p133, %p134
    %p136 = scmp.ne.s32.totalorder %s128, %s131
    %p137 = scmp.eq.s32.totalorder %s9, 0
    %p138 = por %p136, %p137
    %p139 = scmp.ne.s32.totalorder %s128, %s131
    %p140 = scmp.eq.s32.totalorder %s14, 31
    %p141 = por %p139, %p140
    %p142 = scmp.ne.s32.totalorder %s131, %s132
    %p143 = scmp.eq.s32.totalorder %s14, 0
    %p144 = por %p142, %p143
    %p145 = scmp.ne.s32.totalorder %s131, %s132
    %p146 = scmp.eq.s32.totalorder %s15, 31
    %p147 = por %p145, %p146
    %p149 = scmp.ne.s32.totalorder %s132, %s148
    %p150 = scmp.eq.s32.totalorder %s15, 0
    %p151 = por %p149, %p150
    %p152 = scmp.le.s32.totalorder 1, %s9
    %p153 = scmp.lt.s32.totalorder %s9, 33
    %p154 = pnand %p152, %p153
    %p155 = pneg %p154
    // Predicated region
    $region9: #{_lambda_.11} parent=5 // pred_check
      _
    $region10: #{_lambda_.11} parent=5 // pred_check_branch
      %157 = sbr.rel (%p154) target = $region12
    $region11: #{_lambda_.11} parent=5 // pred_region
      %s158 = ssub.s32 %s9, 1
    $region12: #{_lambda_.11} parent=5 // pred_fallthru
      _
    %p159 = scmp.lt.s32.totalorder %s9, 32
    // Predicated region
    $region13: #{_lambda_.11} parent=5 // pred_check
      %p160 = pneg %p159
    $region14: #{_lambda_.11} parent=5 // pred_check_branch
      %162 = sbr.rel (%p160) target = $region16
    $region15: #{_lambda_.11} parent=5 // pred_region
      // Predicated region
      $region17: #{_lambda_.11} parent=15 // pred_check
        %p163 = pneg %p50
      $region18: #{_lambda_.11} parent=15 // pred_check_branch
        %165 = sbr.rel (%p163) target = $region20
      $region19: #{_lambda_.11} parent=15 // pred_region
        %p166 = scmp.lt.s32.totalorder %s16, 7
        %s167 = scalar_select %p166, %s16, 7
        %p168 = scmp.lt.s32.totalorder %s17, 3
        %s169 = scalar_select %p168, %s17, 3
        %s170 = smul.addr %s167, 4
        %s171 = sadd.s32 %s169, %s170
        %s172 = smul.addr %s171, 8
        %s173 = scalar_lea.vmem %s0, %s172
      $region20: #{_lambda_.11} parent=15 // pred_fallthru
        _
      // Predicated region
      $region21: #{_lambda_.11} parent=15 // pred_check
        %p174 = pneg %p80
      $region22: #{_lambda_.11} parent=15 // pred_check_branch
        %176 = sbr.rel (%p174) target = $region24
      $region23: #{_lambda_.11} parent=15 // pred_region
        %p177 = scmp.lt.s32.totalorder %s16, 7
        %s178 = scalar_select %p177, %s16, 7
        %p179 = scmp.lt.s32.totalorder %s17, 3
        %s180 = scalar_select %p179, %s17, 3
        %p181 = scmp.lt.s32.totalorder %s18, 0
        %s182 = scalar_select %p181, %s18, 0
        %s183 = sadd.s32 %s182, %s180
        %s184 = smul.addr %s178, 4
        %s185 = sadd.s32 %s183, %s184
        %s186 = smul.addr %s185, 8
        %s187 = scalar_lea.vmem %s1, %s186
      $region24: #{_lambda_.11} parent=15 // pred_fallthru
        _
      // Predicated region
      $region25: #{_lambda_.11} parent=15 // pred_check
        %p188 = pneg %p110
      $region26: #{_lambda_.11} parent=15 // pred_check_branch
        %190 = sbr.rel (%p188) target = $region28
      $region27: #{_lambda_.11} parent=15 // pred_region
        %p191 = scmp.lt.s32.totalorder %s16, 7
        %s192 = scalar_select %p191, %s16, 7
        %p193 = scmp.lt.s32.totalorder %s17, 3
        %s194 = scalar_select %p193, %s17, 3
        %p195 = scmp.lt.s32.totalorder %s18, 0
        %s196 = scalar_select %p195, %s18, 0
        %s197 = sadd.s32 %s196, %s194
        %s198 = smul.addr %s192, 4
        %s199 = sadd.s32 %s197, %s198
        %s200 = smul.addr %s199, 8
        %s201 = scalar_lea.vmem %s2, %s200
      $region28: #{_lambda_.11} parent=15 // pred_fallthru
        _
    $region16: #{_lambda_.11} parent=5 // pred_fallthru
      _
    %p202 = scmp.le.s32.totalorder 1, %s9
    %p203 = scmp.lt.s32.totalorder %s9, 33
    %p204 = pnand %p202, %p203
    %p205 = pneg %p204
    // Predicated region
    $region29: #{_lambda_.11} parent=5 // pred_check
      _
    $region30: #{_lambda_.11} parent=5 // pred_check_branch
      %207 = sbr.rel (%p204) target = $region32
    $region31: #{_lambda_.11} parent=5 // pred_region
      %s208 = ssub.s32 %s9, 1
      %p209 = scmp.lt.s32.totalorder %s19, 7
      %s210 = scalar_select %p209, %s19, 7
      %p211 = scmp.lt.s32.totalorder %s20, 3
      %s212 = scalar_select %p211, %s20, 3
      %s213 = smul.addr %s210, 4
      %s214 = sadd.s32 %s212, %s213
      %s215 = smul.addr %s214, 8
      %s216 = scalar_lea.vmem %s0, %s215
      %p217 = pneg %p56
      %p218 = pneg %p53
      %p219 = scmp.lt.s32.totalorder %s19, 7
      %s220 = scalar_select %p219, %s19, 7
      %p221 = scmp.lt.s32.totalorder %s20, 3
      %s222 = scalar_select %p221, %s20, 3
      %p223 = scmp.lt.s32.totalorder %s21, 0
      %s224 = scalar_select %p223, %s21, 0
      %s225 = sadd.s32 %s224, %s222
      %s226 = smul.addr %s220, 4
      %s227 = sadd.s32 %s225, %s226
      %s228 = smul.addr %s227, 8
      %s229 = scalar_lea.vmem %s1, %s228
      %p230 = pneg %p86
      %p231 = pneg %p83
      %p232 = scmp.lt.s32.totalorder %s19, 7
      %s233 = scalar_select %p232, %s19, 7
      %p234 = scmp.lt.s32.totalorder %s20, 3
      %s235 = scalar_select %p234, %s20, 3
      %p236 = scmp.lt.s32.totalorder %s21, 0
      %s237 = scalar_select %p236, %s21, 0
      %s238 = sadd.s32 %s237, %s235
      %s239 = smul.addr %s233, 4
      %s240 = sadd.s32 %s238, %s239
      %s241 = smul.addr %s240, 8
      %s242 = scalar_lea.vmem %s2, %s241
      %p243 = pneg %p116
      %p244 = pneg %p113
      %p245 = pneg %p144
      %p246 = pneg %p141
      %p247 = scmp.lt.s32.totalorder %s19, 7
      %s248 = scalar_select %p247, %s19, 7
      %p249 = scmp.lt.s32.totalorder %s20, 3
      %s250 = scalar_select %p249, %s20, 3
      %s251 = smul.addr %s248, 4
      %s252 = sadd.s32 %s250, %s251
      %s253 = smul.addr %s252, 8
      %s254 = scalar_lea.vmem %s3, %s253
      %p255 = scmp.lt.s32.totalorder %s19, 7
      %s256 = scalar_select %p255, %s19, 7
      %p257 = scmp.lt.s32.totalorder %s20, 3
      %s258 = scalar_select %p257, %s20, 3
      %s259 = smul.addr %s256, 4
      %s260 = sadd.s32 %s258, %s259
      %s261 = smul.addr %s260, 8
      %s262 = scalar_lea.vmem %s0, %s261
      %p263 = scmp.lt.s32.totalorder %s19, 7
      %s264 = scalar_select %p263, %s19, 7
      %p265 = scmp.lt.s32.totalorder %s20, 3
      %s266 = scalar_select %p265, %s20, 3
      %p267 = scmp.lt.s32.totalorder %s21, 0
      %s268 = scalar_select %p267, %s21, 0
      %s269 = sadd.s32 %s268, %s266
      %s270 = smul.addr %s264, 4
      %s271 = sadd.s32 %s269, %s270
      %s272 = smul.addr %s271, 8
      %s273 = scalar_lea.vmem %s1, %s272
      %p274 = scmp.lt.s32.totalorder %s19, 7
      %s275 = scalar_select %p274, %s19, 7
      %p276 = scmp.lt.s32.totalorder %s20, 3
      %s277 = scalar_select %p276, %s20, 3
      %p278 = scmp.lt.s32.totalorder %s21, 0
      %s279 = scalar_select %p278, %s21, 0
      %s280 = sadd.s32 %s279, %s277
      %s281 = smul.addr %s275, 4
      %s282 = sadd.s32 %s280, %s281
      %s283 = smul.addr %s282, 8
      %s284 = scalar_lea.vmem %s2, %s283
      %p285 = scmp.lt.s32.totalorder %s19, 7
      %s286 = scalar_select %p285, %s19, 7
      %p287 = scmp.lt.s32.totalorder %s20, 3
      %s288 = scalar_select %p287, %s20, 3
      %s289 = smul.addr %s286, 4
      %s290 = sadd.s32 %s288, %s289
      %s291 = smul.addr %s290, 8
      %s292 = scalar_lea.vmem %s3, %s291
      %p293 = scmp.eq.s32.totalorder %s21, 0
      // Predicated region
      $region33: #{_lambda_.11} parent=31 // pred_check
        %p294 = pneg %p293
      $region34: #{_lambda_.11} parent=31 // pred_check_branch
        %296 = sbr.rel (%p294) target = $region36
      $region35: #{_lambda_.11} parent=31 // pred_region
        %vm297 = vcmask 7168
        %298 = vst.msk [vmem:[#allocation2] sm:$0xff] %vm297, -inf
        %299 = vst.msk [vmem:[#allocation3] sm:$0xff] %vm297, 0.0
        %vm300 = vcmask 64512
        %301 = vst.msk [vmem:[#allocation4] sm:$0xff] %vm300, 0.0
      $region36: #{_lambda_.11} parent=31 // pred_fallthru
        _
      %v302 = vld [vmem:[%s262] sm:$0xff]
      %v303 = vmul.f32 %v302, 0.35355338
      %v304 = vld [vmem:[%s273] sm:$0xff]
      %v305 = vld [vmem:[%s284] sm:$0xff]
      %vm306 = vcmask 64512
      %v308 = vsel %vm306, %v303, 0
      %v311 = vsel %vm306, %v304, 0
      %313 = vmatpush.xpose.msra.mxu0 0.0
      %314 = vmatpush.xpose.msra.mxu0 0.0
      %315 = vmatpush.xpose.msra.mxu0 0.0
      %316 = vmatpush.xpose.msra.mxu0 0.0
      %317 = vmatpush.xpose.msra.mxu0 0.0
      %318 = vmatpush.xpose.msra.mxu0 0.0
      %319 = vmatpush.xpose.msra.mxu0 0.0
      %320 = vmatpush.xpose.msra.mxu0 0.0
      %321 = vmatpush.xpose.msra.mxu0 0.0
      %322 = vmatpush.xpose.msra.mxu0 0.0
      %323 = vmatpush.xpose.msra.mxu0 0.0
      %324 = vmatpush.xpose.msra.mxu0 0.0
      %325 = vmatpush.xpose.msra.mxu0 0.0
      %326 = vmatpush.xpose.msra.mxu0 0.0
      %327 = vmatpush.xpose.msra.mxu0 0.0
      %328 = vmatpush.xpose.msra.mxu0 %v311
      %329 = vmatmul.f32.gmra.mxu0 %v308
      %v330 = vpop.f32.mrf.mxu0
      %v331 = vadd.f32 0.0, %v330
      %332 = vdwg.mxu0
      %v333 = vld [vmem:[#allocation2] sm:$0xff]
      %v334 = vsel %vm306, %v331, -inf
      %335 = vmax.xlane.f32.xlu0 %v334
      %v336 = vpop.xlane.xlu0 %335
      %v337 = vmax.f32 %v333, %v336
      %v338 = vsub.f32 %v333, %v337
      %v339 = vmul.f32 %v338, 1.442695
      %v340 = vpow.pop %v339
      %342 = vset.pattern.permute.xlu0 0
      %343 = vperm.xlu0 %342, %v337
      %v344 = vpop.permute.xlu0 %343
      %v346 = vsub.f32 %v331, %v344
      %v347 = vmul.f32 %v346, 1.442695
      %v348 = vpow.pop %v347
      %v349 = vld [vmem:[#allocation3] sm:$0xff]
      %v350 = vmul.f32 %v340, %v349
      %v351 = vsel %vm306, %v348, 0.0
      %352 = vadd.xlane.f32.xlu0 %v351
      %v353 = vpop.xlane.xlu0 %352
      %v354 = vadd.f32 %v350, %v353
      %vm355 = vcmask 7168
      %356 = vst.msk [vmem:[#allocation3] sm:$0xff] %vm355, %v354
      %v357 = vld [vmem:[#allocation4] sm:$0xff]
      %359 = vset.pattern.permute.xlu0 0
      %360 = vperm.xlu0 %359, %v340
      %v361 = vpop.permute.xlu0 %360
      %v363 = vmul.f32 %v361, %v357
      %v365 = vsel %vm306, %v348, 0
      %367 = vmatpush.msra.mxu0 0.0
      %368 = vmatpush.msra.mxu0 0.0
      %369 = vmatpush.msra.mxu0 0.0
      %370 = vmatpush.msra.mxu0 0.0
      %371 = vmatpush.msra.mxu0 0.0
      %372 = vmatpush.msra.mxu0 0.0
      %373 = vmatpush.msra.mxu0 0.0
      %374 = vmatpush.msra.mxu0 0.0
      %375 = vmatpush.msra.mxu0 0.0
      %376 = vmatpush.msra.mxu0 0.0
      %377 = vmatpush.msra.mxu0 0.0
      %378 = vmatpush.msra.mxu0 0.0
      %379 = vmatpush.msra.mxu0 0.0
      %380 = vmatpush.msra.mxu0 0.0
      %381 = vmatpush.msra.mxu0 0.0
      %382 = vmatpush.msra.mxu0 %v305
      %383 = vmatmul.f32.gmra.mxu0 %v365
      %v384 = vpop.f32.mrf.mxu0
      %v385 = vadd.f32 0.0, %v384
      %386 = vdwg.mxu0
      %v387 = vadd.f32 %v363, %v385
      %388 = vst.msk [vmem:[#allocation4] sm:$0xff] %vm306, %v387
      %389 = vst.msk [vmem:[#allocation2] sm:$0xff] %vm355, %v337
      // Predicated region
      $region37: #{_lambda_.11} parent=31 // pred_check
        %p390 = pneg %p293
      $region38: #{_lambda_.11} parent=31 // pred_check_branch
        %392 = sbr.rel (%p390) target = $region40
      $region39: #{_lambda_.11} parent=31 // pred_region
        %v393 = vld [vmem:[#allocation3] sm:$0xff]
        %v394 = vrcp.pop %v393
        %v395 = vmul.f32 %v393, %v394
        %v396 = vsub.f32 1.0, %v395
        %v397 = vmul.f32 %v394, %v396
        %v398 = vadd.f32 %v394, %v397
        %vm399 = vweird.f32 %v393
        %vm400 = vweird.f32 %v394
        %vm401 = vmor %vm399, %vm400
        %v402 = vsel %vm401, %v394, %v398
        %v403 = vand.u32 2147483647, %v393
        %vm404 = vcmp.eq.f32.partialorder %v403, 8.507059e+37
        %v405 = vand.u32 %v393, 2147483648
        %v406 = vor.u32 1.1754944e-38, %v405
        %v407 = vsel %vm404, %v406, %v402
        %v408 = vld [vmem:[#allocation4] sm:$0xff]
        %410 = vset.pattern.permute.xlu0 0
        %411 = vperm.xlu0 %410, %v407
        %v412 = vpop.permute.xlu0 %411
        %v414 = vmul.f32 %v408, %v412
        %415 = vst.msk [vmem:[%s292] sm:$0xff] %vm306, %v414
      $region40: #{_lambda_.11} parent=31 // pred_fallthru
        _
      %p416 = scmp.lt.s32.totalorder %s19, 7
      %s417 = scalar_select %p416, %s19, 7
      %p418 = scmp.lt.s32.totalorder %s20, 3
      %s419 = scalar_select %p418, %s20, 3
      %s420 = smul.addr %s417, 4
      %s421 = sadd.s32 %s419, %s420
      %s422 = smul.addr %s421, 8
      %s423 = scalar_lea.vmem %s3, %s422
      // Predicated region
      $region41: #{_lambda_.11} parent=31 // pred_check
        %p424 = pneg %p141
      $region42: #{_lambda_.11} parent=31 // pred_check_branch
        %426 = sbr.rel (%p424) target = $region44
      $region43: #{_lambda_.11} parent=31 // pred_region
        _
      $region44: #{_lambda_.11} parent=31 // pred_fallthru
        _
    $region32: #{_lambda_.11} parent=5 // pred_fallthru
      _
    %p427 = scmp.le.s32.totalorder 2, %s9
    // Predicated region
    $region45: #{_lambda_.11} parent=5 // pred_check
      %p428 = pneg %p427
    $region46: #{_lambda_.11} parent=5 // pred_check_branch
      %430 = sbr.rel (%p428) target = $region48
    $region47: #{_lambda_.11} parent=5 // pred_region
      %s431 = ssub.s32 %s9, 2
      // Predicated region
      $region49: #{_lambda_.11} parent=47 // pred_check
        %p432 = pneg %p147
      $region50: #{_lambda_.11} parent=47 // pred_check_branch
        %434 = sbr.rel (%p432) target = $region52
      $region51: #{_lambda_.11} parent=47 // pred_region
        %p435 = scmp.lt.s32.totalorder %s22, 7
        %s436 = scalar_select %p435, %s22, 7
        %p437 = scmp.lt.s32.totalorder %s23, 3
        %s438 = scalar_select %p437, %s23, 3
        %s439 = smul.addr %s436, 4
        %s440 = sadd.s32 %s438, %s439
        %s441 = smul.addr %s440, 8
        %s442 = scalar_lea.vmem %s3, %s441
      $region52: #{_lambda_.11} parent=47 // pred_fallthru
        _
    $region48: #{_lambda_.11} parent=5 // pred_fallthru
      _
  $region6: #{_lambda_.11} parent=0 // loop_footer
    %s13 = sadd.s32 1, %s9
  $region7: #{_lambda_.11} parent=0 // loop_footer_branch
    %8 = sbr.rel target = $region3
  $region8: #{_lambda_.11} parent=0 // loop_exit
    _

// kernel: _lambda_.13
$region0: #{_lambda_.13}
  #allocation0 [shape = 'u32[]', space=smem, size = 0x4, offset = 0x4, fixed_abs, tag = 'smem constant byte address 0x4 - core index']
  #allocation1 [shape = 'u32[72,128]{1,0:T(1,128)}', space=vmem, size = 0x9000, scoped, tag = 'internal scratch']
  %s0 = inlined_call_operand.vmem [shape: f32[64,32], index: 0, kind: input, shape index: {}]
  %s1 = inlined_call_operand.vmem [shape: f32[64,32], index: 1, kind: input, shape index: {}]
  %s2 = inlined_call_operand.vmem [shape: f32[32,32], index: 2, kind: input, shape index: {}]
  %s3 = inlined_call_operand.vmem [shape: f32[1,32], index: 3, kind: input, shape index: {}]
  %s4 = inlined_call_operand.vmem [shape: f32[1,32], index: 4, kind: input, shape index: {}]
  %s5 = inlined_call_operand.vmem [shape: f32[64,32], index: 5, kind: input, shape index: {}]
  %s6 = inlined_call_operand.hbm [shape: f32[64,32], index: 6, kind: output, shape index: {}]
  %s7 = sld [smem:[#allocation0]]
  $region34: #{_lambda_.13} parent=0
    _
  %s9 = ssub.s32 1, %s7
  %s10 = scalar_select 0, %s9, %s7
  $region1: #{_lambda_.13} parent=0
    #allocation2 [shape = 'u8[32768]{0}', space=vmem, size = 0x8000, scoped, tag = 'output window, operand 0, single buffered']
    #allocation3 [shape = 's32[1]{0}', space=sflag, size = 0x4, scoped, tag = 'scoped memory for _lambda_.13']
    %11 = vsyncpa [#allocation3], 0
    // Predicated region
    $region2: #{_lambda_.13} parent=1 // pred_check
      _
    $region3: #{_lambda_.13} parent=1 // pred_check_branch
      %13 = sbr.rel (0) target = $region5
    $region4: #{_lambda_.13} parent=1 // pred_region
      _
    $region5: #{_lambda_.13} parent=1 // pred_fallthru
      _
    // Predicated region
    $region6: #{_lambda_.13} parent=1 // pred_check
      _
    $region7: #{_lambda_.13} parent=1 // pred_check_branch
      %15 = sbr.rel (0) target = $region9
    $region8: #{_lambda_.13} parent=1 // pred_region
      _
    $region9: #{_lambda_.13} parent=1 // pred_fallthru
      _
    // Predicated region
    $region10: #{_lambda_.13} parent=1 // pred_check
      _
    $region11: #{_lambda_.13} parent=1 // pred_check_branch
      %17 = sbr.rel (0) target = $region13
    $region12: #{_lambda_.13} parent=1 // pred_region
      _
    $region13: #{_lambda_.13} parent=1 // pred_fallthru
      _
    // Predicated region
    $region14: #{_lambda_.13} parent=1 // pred_check
      _
    $region15: #{_lambda_.13} parent=1 // pred_check_branch
      %19 = sbr.rel (0) target = $region17
    $region16: #{_lambda_.13} parent=1 // pred_region
      _
    $region17: #{_lambda_.13} parent=1 // pred_fallthru
      _
    // Predicated region
    $region18: #{_lambda_.13} parent=1 // pred_check
      _
    $region19: #{_lambda_.13} parent=1 // pred_check_branch
      %21 = sbr.rel (0) target = $region21
    $region20: #{_lambda_.13} parent=1 // pred_region
      _
    $region21: #{_lambda_.13} parent=1 // pred_fallthru
      _
    // Predicated region
    $region22: #{_lambda_.13} parent=1 // pred_check
      _
    $region23: #{_lambda_.13} parent=1 // pred_check_branch
      %23 = sbr.rel (0) target = $region25
    $region24: #{_lambda_.13} parent=1 // pred_region
      _
    $region25: #{_lambda_.13} parent=1 // pred_fallthru
      _
    %v24 = vld [vmem:[%s0] sm:$0xff]
    %v25 = vld [vmem:[%s0 + $0x8] sm:$0xff]
    %v26 = vld [vmem:[%s0 + $0x10] sm:$0xff]
    %v27 = vld [vmem:[%s0 + $0x18] sm:$0xff]
    %v28 = vld [vmem:[%s0 + $0x20] sm:$0xff]
    %v29 = vld [vmem:[%s0 + $0x28] sm:$0xff]
    %v30 = vld [vmem:[%s0 + $0x30] sm:$0xff]
    %v31 = vld [vmem:[%s0 + $0x38] sm:$0xff]
    %v32 = vld [vmem:[%s1] sm:$0xff]
    %v33 = vld [vmem:[%s1 + $0x8] sm:$0xff]
    %v34 = vld [vmem:[%s1 + $0x10] sm:$0xff]
    %v35 = vld [vmem:[%s1 + $0x18] sm:$0xff]
    %v36 = vld [vmem:[%s1 + $0x20] sm:$0xff]
    %v37 = vld [vmem:[%s1 + $0x28] sm:$0xff]
    %v38 = vld [vmem:[%s1 + $0x30] sm:$0xff]
    %v39 = vld [vmem:[%s1 + $0x38] sm:$0xff]
    %v40 = vadd.f32 %v24, %v32
    %v41 = vadd.f32 %v25, %v33
    %v42 = vadd.f32 %v26, %v34
    %v43 = vadd.f32 %v27, %v35
    %v44 = vadd.f32 %v28, %v36
    %v45 = vadd.f32 %v29, %v37
    %v46 = vadd.f32 %v30, %v38
    %v47 = vadd.f32 %v31, %v39
    %v48 = vld [vmem:[%s2] sm:$0xff]
    %v49 = vld [vmem:[%s2 + $0x8] sm:$0xff]
    %v50 = vld [vmem:[%s2 + $0x10] sm:$0xff]
    %v51 = vld [vmem:[%s2 + $0x18] sm:$0xff]
    %v52 = vld [vmem:[%s3] sm:$0x1]
    %v54 = vperm.slane %v52, 0
    %vm56 = vcmask 261120
    %v58 = vsel %vm56, %v40, 0
    %v61 = vsel %vm56, %v41, 0
    %v64 = vsel %vm56, %v42, 0
    %v67 = vsel %vm56, %v43, 0
    %v70 = vsel %vm56, %v44, 0
    %v73 = vsel %vm56, %v45, 0
    %v76 = vsel %vm56, %v46, 0
    %v79 = vsel %vm56, %v47, 0
    %81 = vmatpush.msra.mxu0 0.0
    %82 = vmatpush.msra.mxu0 0.0
    %83 = vmatpush.msra.mxu0 0.0
    %84 = vmatpush.msra.mxu0 0.0
    %85 = vmatpush.msra.mxu0 0.0
    %86 = vmatpush.msra.mxu0 0.0
    %87 = vmatpush.msra.mxu0 0.0
    %88 = vmatpush.msra.mxu0 0.0
    %89 = vmatpush.msra.mxu0 0.0
    %90 = vmatpush.msra.mxu0 0.0
    %91 = vmatpush.msra.mxu0 0.0
    %92 = vmatpush.msra.mxu0 0.0
    %93 = vmatpush.msra.mxu0 %v51
    %94 = vmatpush.msra.mxu0 %v50
    %95 = vmatpush.msra.mxu0 %v49
    %96 = vmatpush.msra.mxu0 %v48
    %97 = vmatmul.f32.gmra.mxu0 %v58
    %v98 = vpop.f32.mrf.mxu0
    %v99 = vadd.f32 %v54, %v98
    %100 = vmatmul.f32.gmra.mxu0 %v61
    %v101 = vpop.f32.mrf.mxu0
    %v102 = vadd.f32 %v54, %v101
    %103 = vmatmul.f32.gmra.mxu0 %v64
    %v104 = vpop.f32.mrf.mxu0
    %v105 = vadd.f32 %v54, %v104
    %106 = vmatmul.f32.gmra.mxu0 %v67
    %v107 = vpop.f32.mrf.mxu0
    %v108 = vadd.f32 %v54, %v107
    %109 = vmatmul.f32.gmra.mxu0 %v70
    %v110 = vpop.f32.mrf.mxu0
    %v111 = vadd.f32 %v54, %v110
    %112 = vmatmul.f32.gmra.mxu0 %v73
    %v113 = vpop.f32.mrf.mxu0
    %v114 = vadd.f32 %v54, %v113
    %115 = vmatmul.f32.gmra.mxu0 %v76
    %v116 = vpop.f32.mrf.mxu0
    %v117 = vadd.f32 %v54, %v116
    %118 = vmatmul.f32.gmra.mxu0 %v79
    %v119 = vpop.f32.mrf.mxu0
    %v120 = vadd.f32 %v54, %v119
    %121 = vdwg.mxu0
    %v122 = vld [vmem:[%s5] sm:$0xff]
    %v123 = vld [vmem:[%s5 + $0x8] sm:$0xff]
    %v124 = vld [vmem:[%s5 + $0x10] sm:$0xff]
    %v125 = vld [vmem:[%s5 + $0x18] sm:$0xff]
    %v126 = vld [vmem:[%s5 + $0x20] sm:$0xff]
    %v127 = vld [vmem:[%s5 + $0x28] sm:$0xff]
    %v128 = vld [vmem:[%s5 + $0x30] sm:$0xff]
    %v129 = vld [vmem:[%s5 + $0x38] sm:$0xff]
    %v130 = vld [vmem:[%s4] sm:$0x1]
    %v132 = vperm.slane %v130, 0
    %v134 = vmul.f32 %v99, %v132
    %v135 = vmul.f32 %v102, %v132
    %v136 = vmul.f32 %v105, %v132
    %v137 = vmul.f32 %v108, %v132
    %v138 = vmul.f32 %v111, %v132
    %v139 = vmul.f32 %v114, %v132
    %v140 = vmul.f32 %v117, %v132
    %v141 = vmul.f32 %v120, %v132
    %v142 = vadd.f32 %v122, %v134
    %v143 = vadd.f32 %v123, %v135
    %v144 = vadd.f32 %v124, %v136
    %v145 = vadd.f32 %v125, %v137
    %v146 = vadd.f32 %v126, %v138
    %v147 = vadd.f32 %v127, %v139
    %v148 = vadd.f32 %v128, %v140
    %v149 = vadd.f32 %v129, %v141
    %150 = vst.msk [vmem:[#allocation2] sm:$0xff] %vm56, %v142
    %151 = vst.msk [vmem:[#allocation2 + $0x8] sm:$0xff] %vm56, %v143
    %152 = vst.msk [vmem:[#allocation2 + $0x10] sm:$0xff] %vm56, %v144
    %153 = vst.msk [vmem:[#allocation2 + $0x18] sm:$0xff] %vm56, %v145
    %154 = vst.msk [vmem:[#allocation2 + $0x20] sm:$0xff] %vm56, %v146
    %155 = vst.msk [vmem:[#allocation2 + $0x28] sm:$0xff] %vm56, %v147
    %156 = vst.msk [vmem:[#allocation2 + $0x30] sm:$0xff] %vm56, %v148
    %157 = vst.msk [vmem:[#allocation2 + $0x38] sm:$0xff] %vm56, %v149
    // Predicated region
    $region26: #{_lambda_.13} parent=1 // pred_check
      _
    $region27: #{_lambda_.13} parent=1 // pred_check_branch
      %159 = sbr.rel (0) target = $region29
    $region28: #{_lambda_.13} parent=1 // pred_region
      %161 = vsyncadd [#allocation3], 0
      %s162 = sshll.u32 [#allocation2], 4
      %s163 = int_to_ptr.vmem [resolvable:$true] %s162
      %s164 = sshll.u32 %s6, 4
      %s165 = int_to_ptr.hbm [resolvable:$true] %s164
      %170 = dma.vmem_to_hbm [thread:$0]  %s163, 1024, %s165, [#allocation3], 128, 128, 8
    $region29: #{_lambda_.13} parent=1 // pred_fallthru
      _
    // Predicated region
    $region30: #{_lambda_.13} parent=1 // pred_check
      _
    $region31: #{_lambda_.13} parent=1 // pred_check_branch
      %172 = sbr.rel (0) target = $region33
    $region32: #{_lambda_.13} parent=1 // pred_region
      %174 = dma.done [#allocation3], 1024
    $region33: #{_lambda_.13} parent=1 // pred_fallthru
      _
    %175 = vsyncpa [#allocation3], 1

</llo_original>
